<compile_context>
chip_gen: v5e
topology: v5e:2x2
jax: 0.10.0
libtpu: 0.0.40
codegen_flags: <defaults>
</compile_context>

<pallas_src>
import jax
import jax.numpy as jnp
from jax import lax
from jax.experimental import pallas as pl
from jax.experimental.pallas import tpu as pltpu


def _conv_matmul_kernel(x_ref, w_ref, o_ref):
    # x_ref: (tm, 9*Cin) bf16 im2col tile
    # w_ref: (9*Cin, Cout) bf16 weights (grid-invariant)
    # o_ref: (tm, Cout)  f32 output tile (lane-dense: Cout = 128)
    o_ref[...] = jnp.dot(
        x_ref[...], w_ref[...], preferred_element_type=jnp.float32
    ).astype(o_ref.dtype)


def _round_up(a, b):
    return (a + b - 1) // b * b


def conv2d_3x3_same(x_nchw, w_oihw, *, tm=256):
    """3x3 stride-1 pad-1 conv, no bias. x: (N, Cin, H, W), w: (Cout, Cin, 3, 3)."""
    N, Cin, H, W = x_nchw.shape
    Cout = w_oihw.shape[0]
    K = 9 * Cin
    M = N * H * W

    # --- wrapper-side layout glue: NHWC + pad + im2col (lane-dense, bf16) ---
    x_nhwc = jnp.transpose(x_nchw, (0, 2, 3, 1))                      # (N, H, W, Cin)
    x_pad = jnp.pad(x_nhwc, ((0, 0), (1, 1), (1, 1), (0, 0)))         # (N, H+2, W+2, Cin)
    taps = [x_pad[:, kh:kh + H, kw:kw + W, :]
            for kh in range(3) for kw in range(3)]                    # 9 x (N, H, W, Cin)
    x_col = jnp.concatenate(taps, axis=-1).reshape(M, K)              # (M, 9*Cin)
    x_col = x_col.astype(jnp.bfloat16)

    # Weight: OIHW -> HWIO -> (kh*kw*Cin, Cout); flattening order matches taps.
    w_col = jnp.transpose(w_oihw, (2, 3, 1, 0)).reshape(K, Cout)
    w_col = w_col.astype(jnp.bfloat16)

    # Tile M into 8-sublane-aligned blocks; pad M up so every block is full.
    tm = min(tm, _round_up(M, 8))
    Mp = _round_up(M, tm)
    if Mp != M:
        x_col = jnp.pad(x_col, ((0, Mp - M), (0, 0)))
    grid = (Mp // tm,)

    out_col = pl.pallas_call(
        _conv_matmul_kernel,
        out_shape=jax.ShapeDtypeStruct((Mp, Cout), jnp.float32),
        grid_spec=pltpu.PrefetchScalarGridSpec(
            num_scalar_prefetch=0,
            grid=grid,
            in_specs=[
                pl.BlockSpec((tm, K), lambda i: (i, 0)),
                pl.BlockSpec((K, Cout), lambda i: (0, 0)),   # grid-invariant weights
            ],
            out_specs=pl.BlockSpec((tm, Cout), lambda i: (i, 0)),
        ),
        compiler_params=pltpu.CompilerParams(
            dimension_semantics=("parallel",),
        ),
        cost_estimate=pl.CostEstimate(
            flops=2 * Mp * K * Cout,
            transcendentals=0,
            bytes_accessed=int(x_col.size) * 2 + int(w_col.size) * 2 + Mp * Cout * 4,
        ),
    )(x_col, w_col)

    out_nhwc = out_col[:M].reshape(N, H, W, Cout).astype(x_nchw.dtype)
    return jnp.transpose(out_nhwc, (0, 3, 1, 2))                      # back to NCHW


if __name__ == "__main__":
    # Channels are fixed at 128 by the module; keep batch/spatial small.
    N, C, H, W = 2, 128, 16, 16

    key = jax.random.PRNGKey(0)
    kx, kw = jax.random.split(key)
    x = jax.random.normal(kx, (N, C, H, W), dtype=jnp.float32)
    # Deterministic weight init (PyTorch layout: (Cout, Cin, kh, kw)).
    w = jax.random.normal(kw, (C, C, 3, 3), dtype=jnp.float32) * 0.05

    out = conv2d_3x3_same(x, w)
    out = jax.block_until_ready(out)

    # Reference via XLA conv to validate semantics.
    ref = lax.conv_general_dilated(
        x, w, window_strides=(1, 1), padding=((1, 1), (1, 1)),
        dimension_numbers=("NCHW", "OIHW", "NCHW"),
    )
    ref = jax.block_until_ready(ref)

    assert out.shape == (N, C, H, W)
    assert jnp.allclose(out, ref, rtol=2e-2, atol=2e-2), "mismatch vs XLA conv reference"

    print("KERNEL_OK")
</pallas_src>

<mosaic_0001>
module attributes {stable_mosaic.version = 11 : i64} {
  func.func @_conv_matmul_kernel(%arg0: i32, %arg1: memref<256x1152xbf16, #tpu.memory_space<vmem>>, %arg2: memref<1152x128xbf16, #tpu.memory_space<vmem>>, %arg3: memref<256x128xf32, #tpu.memory_space<vmem>>) attributes {dimension_semantics = [#tpu.dimension_semantics<parallel>], iteration_bounds = array<i64: 2>, scalar_prefetch = 0 : i64, scratch_operands = 0 : i64, tpu.core_type = #tpu.core_type<tc>, window_params = [{transform_indices = @transform_0, window_bounds = array<i64: 256, 1152>}, {pipeline_mode = #tpu.pipeline_mode<synchronous>, transform_indices = @transform_1, window_bounds = array<i64: 1152, 128>}, {transform_indices = @transform_2, window_bounds = array<i64: 256, 128>}]} {
    %c0 = arith.constant 0 : index
    %c0_0 = arith.constant 0 : index
    %0 = vector.load %arg1[%c0, %c0_0] : memref<256x1152xbf16, #tpu.memory_space<vmem>>, vector<256x1152xbf16>
    %c0_1 = arith.constant 0 : index
    %c0_2 = arith.constant 0 : index
    %1 = vector.load %arg2[%c0_1, %c0_2] : memref<1152x128xbf16, #tpu.memory_space<vmem>>, vector<1152x128xbf16>
    %cst = arith.constant dense<0.000000e+00> : vector<256x128xf32>
    %2 = tpu.matmul %0, %1, %cst {dimension_numbers = #tpu.dot_dimension_numbers<[1], [0], [0], [1], [0, 0, 1, 1], [], []>} : vector<256x1152xbf16>, vector<1152x128xbf16>, vector<256x128xf32> -> vector<256x128xf32>
    %c0_3 = arith.constant 0 : index
    %c0_4 = arith.constant 0 : index
    %3 = vector.load %arg3[%c0_3, %c0_4] : memref<256x128xf32, #tpu.memory_space<vmem>>, vector<256x128xf32>
    tpu.vector_store %arg3[%c0_3, %c0_4], %2 {strides = array<i32>} : memref<256x128xf32, #tpu.memory_space<vmem>>, vector<256x128xf32>,
    return
  }
  func.func @transform_0(%arg0: i32) -> (i32, i32) {
    %c0_i32 = arith.constant 0 : i32
    %c0_i32_0 = arith.constant 0 : i32
    return %arg0, %c0_i32 : i32, i32
  }
  func.func @transform_1(%arg0: i32) -> (i32, i32) {
    %c0_i32 = arith.constant 0 : i32
    %c0_i32_0 = arith.constant 0 : i32
    %c0_i32_1 = arith.constant 0 : i32
    return %c0_i32, %c0_i32_0 : i32, i32
  }
  func.func @transform_2(%arg0: i32) -> (i32, i32) {
    %c0_i32 = arith.constant 0 : i32
    %c0_i32_0 = arith.constant 0 : i32
    return %arg0, %c0_i32 : i32, i32
  }
}

</mosaic_0001>

<llo_original>
// kernel: tpu_custom_call.1
$region0: #{tpu_custom_call.1}
  #allocation0 [shape = 'u32[]', space=smem, size = 0x4, offset = 0x4, fixed_abs, tag = 'smem constant byte address 0x4 - core index']
  #allocation1 [shape = 'u32[72,128]{1,0:T(1,128)}', space=vmem, size = 0x9000, scoped, tag = 'internal scratch']
  %s0 = inlined_call_operand.hbm [shape: bf16[512,1152], index: 0, kind: input, shape index: {}]
  %s1 = inlined_call_operand.hbm [shape: bf16[1152,128], index: 1, kind: input, shape index: {}]
  %s2 = inlined_call_operand.hbm [shape: f32[512,128], index: 2, kind: output, shape index: {}]
  %s3 = sld [smem:[#allocation0]]
  $region49: #{tpu_custom_call.1} parent=0
    _
  %s5 = ssub.s32 1, %s3
  %s6 = scalar_select 0, %s5, %s3
  $region1: #{tpu_custom_call.1} parent=0
    #allocation2 [shape = 'u8[1179648]{0}', space=vmem, size = 0x120000, scoped, tag = 'input window, operand 0']
    #allocation3 [shape = 's32[2]{0}', space=sflag, size = 0x8, scoped, tag = 'scoped memory for tpu_custom_call.1']
    #allocation4 [shape = 's32[2]{0}', space=sflag, size = 0x8, scoped, tag = 'scoped memory for tpu_custom_call.1']
    #allocation5 [shape = 'u8[294912]{0}', space=vmem, size = 0x48000, scoped, tag = 'input window, operand 1, single buffered']
    #allocation6 [shape = 's32[1]{0}', space=sflag, size = 0x4, scoped, tag = 'scoped memory for tpu_custom_call.1']
    #allocation7 [shape = 'u8[262144]{0}', space=vmem, size = 0x40000, scoped, tag = 'output window, operand 0']
    %7 = vsyncpa [#allocation3], 0
    %s8 = scalar_lea.sflag [#allocation3], 1
    %9 = vsyncpa %s8, 0
    %10 = vsyncpa [#allocation6], 0
    %11 = vsyncpa [#allocation4], 0
    %s12 = scalar_lea.sflag [#allocation4], 1
    %13 = vsyncpa %s12, 0
    loop: start=0, step=1, limit=4
    $region2: #{tpu_custom_call.1} parent=1 // loop_pre_header
      _
    $region3: #{tpu_custom_call.1} parent=1 // loop_header
      %s15 = sphi 0, %s19
      %p16 = scmp.ge.s32.totalorder %s15, 4
      %s25 = sphi 0, %s27
      %s28 = sphi 0, %s25
      %s29 = sphi 0, %s28
      %s45 = sphi 0, %s29
      %s49 = sphi 0, %s49
      %s51 = sphi 0, %s49
      %s52 = sphi 0, %s51
      %s66 = sphi 0, %s52
      %s72 = sphi 0, %s74
      %s75 = sphi 0, %s72
      %s76 = sphi 0, %s75
      %s92 = sphi 0, %s76
    $region4: #{tpu_custom_call.1} parent=1 // loop_header_branch
      %18 = sbr.rel (%p16) target = $region8
    $region5: #{tpu_custom_call.1} parent=1 // loop_body
      %s20 = ssub.s32 %s15, 1
      %s21 = ssub.s32 %s15, 2
      %s22 = sadd.s32 %s15, 1
      %s23 = ssub.s32 %s15, %s22
      %p24 = scmp.eq.s32.totalorder %s23, 0
      %s26 = sadd.s32 %s25, 1
      %s27 = scalar_select %p24, %s25, %s26
      %p30 = pneg %p24
      %p31 = scmp.eq.s32.totalorder %s15, 1
      %p32 = por %p30, %p31
      %p33 = scmp.ne.s32.totalorder %s25, %s28
      %p34 = scmp.eq.s32.totalorder %s15, 0
      %p35 = por %p33, %p34
      %p36 = scmp.ne.s32.totalorder %s25, %s28
      %p37 = scmp.eq.s32.totalorder %s20, 1
      %p38 = por %p36, %p37
      %p39 = scmp.ne.s32.totalorder %s28, %s29
      %p40 = scmp.eq.s32.totalorder %s20, 0
      %p41 = por %p39, %p40
      %p42 = scmp.ne.s32.totalorder %s28, %s29
      %p43 = scmp.eq.s32.totalorder %s21, 1
      %p44 = por %p42, %p43
      %p46 = scmp.ne.s32.totalorder %s29, %s45
      %p47 = scmp.eq.s32.totalorder %s21, 0
      %p48 = por %p46, %p47
      %s50 = sadd.s32 %s49, 1
      %p53 = scmp.eq.s32.totalorder %s15, 1
      %p54 = scmp.ne.s32.totalorder %s49, %s51
      %p55 = scmp.eq.s32.totalorder %s15, 0
      %p56 = por %p54, %p55
      %p57 = scmp.ne.s32.totalorder %s49, %s51
      %p58 = scmp.eq.s32.totalorder %s20, 1
      %p59 = por %p57, %p58
      %p60 = scmp.ne.s32.totalorder %s51, %s52
      %p61 = scmp.eq.s32.totalorder %s20, 0
      %p62 = por %p60, %p61
      %p63 = scmp.ne.s32.totalorder %s51, %s52
      %p64 = scmp.eq.s32.totalorder %s21, 1
      %p65 = por %p63, %p64
      %p67 = scmp.ne.s32.totalorder %s52, %s66
      %p68 = scmp.eq.s32.totalorder %s21, 0
      %p69 = por %p67, %p68
      %s70 = ssub.s32 %s15, %s22
      %p71 = scmp.eq.s32.totalorder %s70, 0
      %s73 = sadd.s32 %s72, 1
      %s74 = scalar_select %p71, %s72, %s73
      %p77 = pneg %p71
      %p78 = scmp.eq.s32.totalorder %s15, 1
      %p79 = por %p77, %p78
      %p80 = scmp.ne.s32.totalorder %s72, %s75
      %p81 = scmp.eq.s32.totalorder %s15, 0
      %p82 = por %p80, %p81
      %p83 = scmp.ne.s32.totalorder %s72, %s75
      %p84 = scmp.eq.s32.totalorder %s20, 1
      %p85 = por %p83, %p84
      %p86 = scmp.ne.s32.totalorder %s75, %s76
      %p87 = scmp.eq.s32.totalorder %s20, 0
      %p88 = por %p86, %p87
      %p89 = scmp.ne.s32.totalorder %s75, %s76
      %p90 = scmp.eq.s32.totalorder %s21, 1
      %p91 = por %p89, %p90
      %p93 = scmp.ne.s32.totalorder %s76, %s92
      %p94 = scmp.eq.s32.totalorder %s21, 0
      %p95 = por %p93, %p94
      %p96 = scmp.le.s32.totalorder 1, %s15
      %p97 = scmp.lt.s32.totalorder %s15, 3
      %p98 = pnand %p96, %p97
      %p99 = pneg %p98
      // Predicated region
      $region9: #{tpu_custom_call.1} parent=5 // pred_check
        _
      $region10: #{tpu_custom_call.1} parent=5 // pred_check_branch
        %101 = sbr.rel (%p98) target = $region12
      $region11: #{tpu_custom_call.1} parent=5 // pred_region
        %s102 = ssub.s32 %s15, 1
        // Predicated region
        $region13: #{tpu_custom_call.1} parent=11 // pred_check
          %p103 = pneg %p62
        $region14: #{tpu_custom_call.1} parent=11 // pred_check_branch
          %105 = sbr.rel (%p103) target = $region16
        $region15: #{tpu_custom_call.1} parent=11 // pred_region
          %107 = vsyncadd [#allocation6], 0
          %s108 = sshll.u32 %s1, 4
          %s109 = int_to_ptr.hbm [resolvable:$true] %s108
          %s110 = sshll.u32 [#allocation5], 4
          %s111 = int_to_ptr.vmem [resolvable:$true] %s110
          %116 = dma.hbm_to_vmem [thread:$0]  %s109, 9216, %s111, [#allocation6], 64, 64, 4
        $region16: #{tpu_custom_call.1} parent=11 // pred_fallthru
          _
      $region12: #{tpu_custom_call.1} parent=5 // pred_fallthru
        _
      %p117 = scmp.lt.s32.totalorder %s15, 2
      // Predicated region
      $region17: #{tpu_custom_call.1} parent=5 // pred_check
        %p118 = pneg %p117
      $region18: #{tpu_custom_call.1} parent=5 // pred_check_branch
        %120 = sbr.rel (%p118) target = $region20
      $region19: #{tpu_custom_call.1} parent=5 // pred_region
        // Predicated region
        $region21: #{tpu_custom_call.1} parent=19 // pred_check
          %p121 = pneg %p35
        $region22: #{tpu_custom_call.1} parent=19 // pred_check_branch
          %123 = sbr.rel (%p121) target = $region24
        $region23: #{tpu_custom_call.1} parent=19 // pred_region
          %s124 = sand.u32 %s25, 1
          %s125 = scalar_lea.sflag [#allocation3], %s124
          %s126 = sand.u32 %s25, 1
          %s127 = smul.addr %s126, 1152
          %s128 = scalar_lea.vmem [#allocation2], %s127
          %s129 = smul.u32 32, %s15
          %131 = vsyncadd %s125, 0
          %s132 = smul.addr %s129, 9
          %s133 = smul.addr %s132, 4
          %s134 = scalar_lea.hbm %s0, %s133
          %s135 = sshll.u32 %s134, 4
          %s136 = int_to_ptr.hbm [resolvable:$true] %s135
          %s137 = sshll.u32 %s128, 4
          %s138 = int_to_ptr.vmem [resolvable:$true] %s137
          %143 = dma.hbm_to_vmem [thread:$0]  %s136, 18432, %s138, %s125, 576, 576, 36
        $region24: #{tpu_custom_call.1} parent=19 // pred_fallthru
          _
      $region20: #{tpu_custom_call.1} parent=5 // pred_fallthru
        _
      %p144 = scmp.le.s32.totalorder 1, %s15
      %p145 = scmp.lt.s32.totalorder %s15, 3
      %p146 = pnand %p144, %p145
      %p147 = pneg %p146
      // Predicated region
      $region25: #{tpu_custom_call.1} parent=5 // pred_check
        _
      $region26: #{tpu_custom_call.1} parent=5 // pred_check_branch
        %149 = sbr.rel (%p146) target = $region28
      $region27: #{tpu_custom_call.1} parent=5 // pred_region
        %s150 = ssub.s32 %s15, 1
        %s151 = sand.u32 %s28, 1
        %s152 = scalar_lea.sflag [#allocation3], %s151
        %s153 = sand.u32 %s28, 1
        %s154 = smul.addr %s153, 1152
        %s155 = scalar_lea.vmem [#allocation2], %s154
        // Predicated region
        $region29: #{tpu_custom_call.1} parent=27 // pred_check
          %p156 = pneg %p41
        $region30: #{tpu_custom_call.1} parent=27 // pred_check_branch
          %158 = sbr.rel (%p156) target = $region32
        $region31: #{tpu_custom_call.1} parent=27 // pred_region
          %160 = dma.done %s152, 18432
        $region32: #{tpu_custom_call.1} parent=27 // pred_fallthru
          _
        // Predicated region
        $region33: #{tpu_custom_call.1} parent=27 // pred_check
          %p161 = pneg %p62
        $region34: #{tpu_custom_call.1} parent=27 // pred_check_branch
          %163 = sbr.rel (%p161) target = $region36
        $region35: #{tpu_custom_call.1} parent=27 // pred_region
          %165 = dma.done [#allocation6], 9216
        $region36: #{tpu_custom_call.1} parent=27 // pred_fallthru
          _
        %s166 = sand.u32 %s28, 1
        %s167 = scalar_lea.sflag [#allocation3], %s166
        %s168 = sand.u32 %s28, 1
        %s169 = smul.addr %s168, 1152
        %s170 = scalar_lea.vmem [#allocation2], %s169
        %p171 = pneg %p41
        %p172 = pneg %p38
        %p173 = pneg %p62
        %p174 = pneg %p59
        %p175 = pneg %p88
        %p176 = pneg %p85
        %s177 = sand.u32 %s75, 1
        %s178 = scalar_lea.sflag [#allocation4], %s177
        %s179 = sand.u32 %s75, 1
        %s180 = smul.addr %s179, 256
        %s181 = scalar_lea.vmem [#allocation7], %s180
        %s182 = smul.u32 32, %s20
        %s183 = smul.u32 32, %s20
        %v184 = vld [vmem:[%s155] sm:$0xff]
        %v185 = vld [vmem:[%s155 + $0x8] sm:$0xff]
        %v186 = vld [vmem:[%s155 + $0x10] sm:$0xff]
        %v187 = vld [vmem:[%s155 + $0x18] sm:$0xff]
        %v188 = vld [vmem:[%s155 + $0x20] sm:$0xf]
        %v189 = vld [vmem:[%s155 + $0x24] sm:$0xff]
        %v190 = vld [vmem:[%s155 + $0x2c] sm:$0xff]
        %v191 = vld [vmem:[%s155 + $0x34] sm:$0xff]
        %v192 = vld [vmem:[%s155 + $0x3c] sm:$0xff]
        %v193 = vld [vmem:[%s155 + $0x44] sm:$0xf]
        %v194 = vld [vmem:[%s155 + $0x48] sm:$0xff]
        %v195 = vld [vmem:[%s155 + $0x50] sm:$0xff]
        %v196 = vld [vmem:[%s155 + $0x58] sm:$0xff]
        %v197 = vld [vmem:[%s155 + $0x60] sm:$0xff]
        %v198 = vld [vmem:[%s155 + $0x68] sm:$0xf]
        %v199 = vld [vmem:[%s155 + $0x6c] sm:$0xff]
        %v200 = vld [vmem:[%s155 + $0x74] sm:$0xff]
        %v201 = vld [vmem:[%s155 + $0x7c] sm:$0xff]
        %v202 = vld [vmem:[%s155 + $0x84] sm:$0xff]
        %v203 = vld [vmem:[%s155 + $0x8c] sm:$0xf]
        %v204 = vld [vmem:[%s155 + $0x90] sm:$0xff]
        %v205 = vld [vmem:[%s155 + $0x98] sm:$0xff]
        %v206 = vld [vmem:[%s155 + $0xa0] sm:$0xff]
        %v207 = vld [vmem:[%s155 + $0xa8] sm:$0xff]
        %v208 = vld [vmem:[%s155 + $0xb0] sm:$0xf]
        %v209 = vld [vmem:[%s155 + $0xb4] sm:$0xff]
        %v210 = vld [vmem:[%s155 + $0xbc] sm:$0xff]
        %v211 = vld [vmem:[%s155 + $0xc4] sm:$0xff]
        %v212 = vld [vmem:[%s155 + $0xcc] sm:$0xff]
        %v213 = vld [vmem:[%s155 + $0xd4] sm:$0xf]
        %v214 = vld [vmem:[%s155 + $0xd8] sm:$0xff]
        %v215 = vld [vmem:[%s155 + $0xe0] sm:$0xff]
        %v216 = vld [vmem:[%s155 + $0xe8] sm:$0xff]
        %v217 = vld [vmem:[%s155 + $0xf0] sm:$0xff]
        %v218 = vld [vmem:[%s155 + $0xf8] sm:$0xf]
        %v219 = vld [vmem:[%s155 + $0xfc] sm:$0xff]
        %v220 = vld [vmem:[%s155 + $0x104] sm:$0xff]
        %v221 = vld [vmem:[%s155 + $0x10c] sm:$0xff]
        %v222 = vld [vmem:[%s155 + $0x114] sm:$0xff]
        %v223 = vld [vmem:[%s155 + $0x11c] sm:$0xf]
        %v224 = vld [vmem:[%s155 + $0x120] sm:$0xff]
        %v225 = vld [vmem:[%s155 + $0x128] sm:$0xff]
        %v226 = vld [vmem:[%s155 + $0x130] sm:$0xff]
        %v227 = vld [vmem:[%s155 + $0x138] sm:$0xff]
        %v228 = vld [vmem:[%s155 + $0x140] sm:$0xf]
        %v229 = vld [vmem:[%s155 + $0x144] sm:$0xff]
        %v230 = vld [vmem:[%s155 + $0x14c] sm:$0xff]
        %v231 = vld [vmem:[%s155 + $0x154] sm:$0xff]
        %v232 = vld [vmem:[%s155 + $0x15c] sm:$0xff]
        %v233 = vld [vmem:[%s155 + $0x164] sm:$0xf]
        %v234 = vld [vmem:[%s155 + $0x168] sm:$0xff]
        %v235 = vld [vmem:[%s155 + $0x170] sm:$0xff]
        %v236 = vld [vmem:[%s155 + $0x178] sm:$0xff]
        %v237 = vld [vmem:[%s155 + $0x180] sm:$0xff]
        %v238 = vld [vmem:[%s155 + $0x188] sm:$0xf]
        %v239 = vld [vmem:[%s155 + $0x18c] sm:$0xff]
        %v240 = vld [vmem:[%s155 + $0x194] sm:$0xff]
        %v241 = vld [vmem:[%s155 + $0x19c] sm:$0xff]
        %v242 = vld [vmem:[%s155 + $0x1a4] sm:$0xff]
        %v243 = vld [vmem:[%s155 + $0x1ac] sm:$0xf]
        %v244 = vld [vmem:[%s155 + $0x1b0] sm:$0xff]
        %v245 = vld [vmem:[%s155 + $0x1b8] sm:$0xff]
        %v246 = vld [vmem:[%s155 + $0x1c0] sm:$0xff]
        %v247 = vld [vmem:[%s155 + $0x1c8] sm:$0xff]
        %v248 = vld [vmem:[%s155 + $0x1d0] sm:$0xf]
        %v249 = vld [vmem:[%s155 + $0x1d4] sm:$0xff]
        %v250 = vld [vmem:[%s155 + $0x1dc] sm:$0xff]
        %v251 = vld [vmem:[%s155 + $0x1e4] sm:$0xff]
        %v252 = vld [vmem:[%s155 + $0x1ec] sm:$0xff]
        %v253 = vld [vmem:[%s155 + $0x1f4] sm:$0xf]
        %v254 = vld [vmem:[%s155 + $0x1f8] sm:$0xff]
        %v255 = vld [vmem:[%s155 + $0x200] sm:$0xff]
        %v256 = vld [vmem:[%s155 + $0x208] sm:$0xff]
        %v257 = vld [vmem:[%s155 + $0x210] sm:$0xff]
        %v258 = vld [vmem:[%s155 + $0x218] sm:$0xf]
        %v259 = vld [vmem:[%s155 + $0x21c] sm:$0xff]
        %v260 = vld [vmem:[%s155 + $0x224] sm:$0xff]
        %v261 = vld [vmem:[%s155 + $0x22c] sm:$0xff]
        %v262 = vld [vmem:[%s155 + $0x234] sm:$0xff]
        %v263 = vld [vmem:[%s155 + $0x23c] sm:$0xf]
        %v264 = vld [vmem:[%s155 + $0x240] sm:$0xff]
        %v265 = vld [vmem:[%s155 + $0x248] sm:$0xff]
        %v266 = vld [vmem:[%s155 + $0x250] sm:$0xff]
        %v267 = vld [vmem:[%s155 + $0x258] sm:$0xff]
        %v268 = vld [vmem:[%s155 + $0x260] sm:$0xf]
        %v269 = vld [vmem:[%s155 + $0x264] sm:$0xff]
        %v270 = vld [vmem:[%s155 + $0x26c] sm:$0xff]
        %v271 = vld [vmem:[%s155 + $0x274] sm:$0xff]
        %v272 = vld [vmem:[%s155 + $0x27c] sm:$0xff]
        %v273 = vld [vmem:[%s155 + $0x284] sm:$0xf]
        %v274 = vld [vmem:[%s155 + $0x288] sm:$0xff]
        %v275 = vld [vmem:[%s155 + $0x290] sm:$0xff]
        %v276 = vld [vmem:[%s155 + $0x298] sm:$0xff]
        %v277 = vld [vmem:[%s155 + $0x2a0] sm:$0xff]
        %v278 = vld [vmem:[%s155 + $0x2a8] sm:$0xf]
        %v279 = vld [vmem:[%s155 + $0x2ac] sm:$0xff]
        %v280 = vld [vmem:[%s155 + $0x2b4] sm:$0xff]
        %v281 = vld [vmem:[%s155 + $0x2bc] sm:$0xff]
        %v282 = vld [vmem:[%s155 + $0x2c4] sm:$0xff]
        %v283 = vld [vmem:[%s155 + $0x2cc] sm:$0xf]
        %v284 = vld [vmem:[%s155 + $0x2d0] sm:$0xff]
        %v285 = vld [vmem:[%s155 + $0x2d8] sm:$0xff]
        %v286 = vld [vmem:[%s155 + $0x2e0] sm:$0xff]
        %v287 = vld [vmem:[%s155 + $0x2e8] sm:$0xff]
        %v288 = vld [vmem:[%s155 + $0x2f0] sm:$0xf]
        %v289 = vld [vmem:[%s155 + $0x2f4] sm:$0xff]
        %v290 = vld [vmem:[%s155 + $0x2fc] sm:$0xff]
        %v291 = vld [vmem:[%s155 + $0x304] sm:$0xff]
        %v292 = vld [vmem:[%s155 + $0x30c] sm:$0xff]
        %v293 = vld [vmem:[%s155 + $0x314] sm:$0xf]
        %v294 = vld [vmem:[%s155 + $0x318] sm:$0xff]
        %v295 = vld [vmem:[%s155 + $0x320] sm:$0xff]
        %v296 = vld [vmem:[%s155 + $0x328] sm:$0xff]
        %v297 = vld [vmem:[%s155 + $0x330] sm:$0xff]
        %v298 = vld [vmem:[%s155 + $0x338] sm:$0xf]
        %v299 = vld [vmem:[%s155 + $0x33c] sm:$0xff]
        %v300 = vld [vmem:[%s155 + $0x344] sm:$0xff]
        %v301 = vld [vmem:[%s155 + $0x34c] sm:$0xff]
        %v302 = vld [vmem:[%s155 + $0x354] sm:$0xff]
        %v303 = vld [vmem:[%s155 + $0x35c] sm:$0xf]
        %v304 = vld [vmem:[%s155 + $0x360] sm:$0xff]
        %v305 = vld [vmem:[%s155 + $0x368] sm:$0xff]
        %v306 = vld [vmem:[%s155 + $0x370] sm:$0xff]
        %v307 = vld [vmem:[%s155 + $0x378] sm:$0xff]
        %v308 = vld [vmem:[%s155 + $0x380] sm:$0xf]
        %v309 = vld [vmem:[%s155 + $0x384] sm:$0xff]
        %v310 = vld [vmem:[%s155 + $0x38c] sm:$0xff]
        %v311 = vld [vmem:[%s155 + $0x394] sm:$0xff]
        %v312 = vld [vmem:[%s155 + $0x39c] sm:$0xff]
        %v313 = vld [vmem:[%s155 + $0x3a4] sm:$0xf]
        %v314 = vld [vmem:[%s155 + $0x3a8] sm:$0xff]
        %v315 = vld [vmem:[%s155 + $0x3b0] sm:$0xff]
        %v316 = vld [vmem:[%s155 + $0x3b8] sm:$0xff]
        %v317 = vld [vmem:[%s155 + $0x3c0] sm:$0xff]
        %v318 = vld [vmem:[%s155 + $0x3c8] sm:$0xf]
        %v319 = vld [vmem:[%s155 + $0x3cc] sm:$0xff]
        %v320 = vld [vmem:[%s155 + $0x3d4] sm:$0xff]
        %v321 = vld [vmem:[%s155 + $0x3dc] sm:$0xff]
        %v322 = vld [vmem:[%s155 + $0x3e4] sm:$0xff]
        %v323 = vld [vmem:[%s155 + $0x3ec] sm:$0xf]
        %v324 = vld [vmem:[%s155 + $0x3f0] sm:$0xff]
        %v325 = vld [vmem:[%s155 + $0x3f8] sm:$0xff]
        %v326 = vld [vmem:[%s155 + $0x400] sm:$0xff]
        %v327 = vld [vmem:[%s155 + $0x408] sm:$0xff]
        %v328 = vld [vmem:[%s155 + $0x410] sm:$0xf]
        %v329 = vld [vmem:[%s155 + $0x414] sm:$0xff]
        %v330 = vld [vmem:[%s155 + $0x41c] sm:$0xff]
        %v331 = vld [vmem:[%s155 + $0x424] sm:$0xff]
        %v332 = vld [vmem:[%s155 + $0x42c] sm:$0xff]
        %v333 = vld [vmem:[%s155 + $0x434] sm:$0xf]
        %v334 = vld [vmem:[%s155 + $0x438] sm:$0xff]
        %v335 = vld [vmem:[%s155 + $0x440] sm:$0xff]
        %v336 = vld [vmem:[%s155 + $0x448] sm:$0xff]
        %v337 = vld [vmem:[%s155 + $0x450] sm:$0xff]
        %v338 = vld [vmem:[%s155 + $0x458] sm:$0xf]
        %v339 = vld [vmem:[%s155 + $0x45c] sm:$0xff]
        %v340 = vld [vmem:[%s155 + $0x464] sm:$0xff]
        %v341 = vld [vmem:[%s155 + $0x46c] sm:$0xff]
        %v342 = vld [vmem:[%s155 + $0x474] sm:$0xff]
        %v343 = vld [vmem:[%s155 + $0x47c] sm:$0xf]
        %v344 = vld [vmem:[#allocation5] sm:$0xf]
        %v345 = vld [vmem:[#allocation5 + $0x4] sm:$0xf]
        %v346 = vld [vmem:[#allocation5 + $0x8] sm:$0xf]
        %v347 = vld [vmem:[#allocation5 + $0xc] sm:$0xf]
        %v348 = vld [vmem:[#allocation5 + $0x10] sm:$0xf]
        %v349 = vld [vmem:[#allocation5 + $0x14] sm:$0xf]
        %v350 = vld [vmem:[#allocation5 + $0x18] sm:$0xf]
        %v351 = vld [vmem:[#allocation5 + $0x1c] sm:$0xf]
        %v352 = vld [vmem:[#allocation5 + $0x20] sm:$0xf]
        %v353 = vld [vmem:[#allocation5 + $0x24] sm:$0xf]
        %v354 = vld [vmem:[#allocation5 + $0x28] sm:$0xf]
        %v355 = vld [vmem:[#allocation5 + $0x2c] sm:$0xf]
        %v356 = vld [vmem:[#allocation5 + $0x30] sm:$0xf]
        %v357 = vld [vmem:[#allocation5 + $0x34] sm:$0xf]
        %v358 = vld [vmem:[#allocation5 + $0x38] sm:$0xf]
        %v359 = vld [vmem:[#allocation5 + $0x3c] sm:$0xf]
        %v360 = vld [vmem:[#allocation5 + $0x40] sm:$0xf]
        %v361 = vld [vmem:[#allocation5 + $0x44] sm:$0xf]
        %v362 = vld [vmem:[#allocation5 + $0x48] sm:$0xf]
        %v363 = vld [vmem:[#allocation5 + $0x4c] sm:$0xf]
        %v364 = vld [vmem:[#allocation5 + $0x50] sm:$0xf]
        %v365 = vld [vmem:[#allocation5 + $0x54] sm:$0xf]
        %v366 = vld [vmem:[#allocation5 + $0x58] sm:$0xf]
        %v367 = vld [vmem:[#allocation5 + $0x5c] sm:$0xf]
        %v368 = vld [vmem:[#allocation5 + $0x60] sm:$0xf]
        %v369 = vld [vmem:[#allocation5 + $0x64] sm:$0xf]
        %v370 = vld [vmem:[#allocation5 + $0x68] sm:$0xf]
        %v371 = vld [vmem:[#allocation5 + $0x6c] sm:$0xf]
        %v372 = vld [vmem:[#allocation5 + $0x70] sm:$0xf]
        %v373 = vld [vmem:[#allocation5 + $0x74] sm:$0xf]
        %v374 = vld [vmem:[#allocation5 + $0x78] sm:$0xf]
        %v375 = vld [vmem:[#allocation5 + $0x7c] sm:$0xf]
        %v376 = vld [vmem:[#allocation5 + $0x80] sm:$0xf]
        %v377 = vld [vmem:[#allocation5 + $0x84] sm:$0xf]
        %v378 = vld [vmem:[#allocation5 + $0x88] sm:$0xf]
        %v379 = vld [vmem:[#allocation5 + $0x8c] sm:$0xf]
        %v380 = vld [vmem:[#allocation5 + $0x90] sm:$0xf]
        %v381 = vld [vmem:[#allocation5 + $0x94] sm:$0xf]
        %v382 = vld [vmem:[#allocation5 + $0x98] sm:$0xf]
        %v383 = vld [vmem:[#allocation5 + $0x9c] sm:$0xf]
        %v384 = vld [vmem:[#allocation5 + $0xa0] sm:$0xf]
        %v385 = vld [vmem:[#allocation5 + $0xa4] sm:$0xf]
        %v386 = vld [vmem:[#allocation5 + $0xa8] sm:$0xf]
        %v387 = vld [vmem:[#allocation5 + $0xac] sm:$0xf]
        %v388 = vld [vmem:[#allocation5 + $0xb0] sm:$0xf]
        %v389 = vld [vmem:[#allocation5 + $0xb4] sm:$0xf]
        %v390 = vld [vmem:[#allocation5 + $0xb8] sm:$0xf]
        %v391 = vld [vmem:[#allocation5 + $0xbc] sm:$0xf]
        %v392 = vld [vmem:[#allocation5 + $0xc0] sm:$0xf]
        %v393 = vld [vmem:[#allocation5 + $0xc4] sm:$0xf]
        %v394 = vld [vmem:[#allocation5 + $0xc8] sm:$0xf]
        %v395 = vld [vmem:[#allocation5 + $0xcc] sm:$0xf]
        %v396 = vld [vmem:[#allocation5 + $0xd0] sm:$0xf]
        %v397 = vld [vmem:[#allocation5 + $0xd4] sm:$0xf]
        %v398 = vld [vmem:[#allocation5 + $0xd8] sm:$0xf]
        %v399 = vld [vmem:[#allocation5 + $0xdc] sm:$0xf]
        %v400 = vld [vmem:[#allocation5 + $0xe0] sm:$0xf]
        %v401 = vld [vmem:[#allocation5 + $0xe4] sm:$0xf]
        %v402 = vld [vmem:[#allocation5 + $0xe8] sm:$0xf]
        %v403 = vld [vmem:[#allocation5 + $0xec] sm:$0xf]
        %v404 = vld [vmem:[#allocation5 + $0xf0] sm:$0xf]
        %v405 = vld [vmem:[#allocation5 + $0xf4] sm:$0xf]
        %v406 = vld [vmem:[#allocation5 + $0xf8] sm:$0xf]
        %v407 = vld [vmem:[#allocation5 + $0xfc] sm:$0xf]
        %v408 = vld [vmem:[#allocation5 + $0x100] sm:$0xf]
        %v409 = vld [vmem:[#allocation5 + $0x104] sm:$0xf]
        %v410 = vld [vmem:[#allocation5 + $0x108] sm:$0xf]
        %v411 = vld [vmem:[#allocation5 + $0x10c] sm:$0xf]
        %v412 = vld [vmem:[#allocation5 + $0x110] sm:$0xf]
        %v413 = vld [vmem:[#allocation5 + $0x114] sm:$0xf]
        %v414 = vld [vmem:[#allocation5 + $0x118] sm:$0xf]
        %v415 = vld [vmem:[#allocation5 + $0x11c] sm:$0xf]
        %v416 = vld [vmem:[#allocation5 + $0x120] sm:$0xf]
        %v417 = vld [vmem:[#allocation5 + $0x124] sm:$0xf]
        %v418 = vld [vmem:[#allocation5 + $0x128] sm:$0xf]
        %v419 = vld [vmem:[#allocation5 + $0x12c] sm:$0xf]
        %v420 = vld [vmem:[#allocation5 + $0x130] sm:$0xf]
        %v421 = vld [vmem:[#allocation5 + $0x134] sm:$0xf]
        %v422 = vld [vmem:[#allocation5 + $0x138] sm:$0xf]
        %v423 = vld [vmem:[#allocation5 + $0x13c] sm:$0xf]
        %v424 = vld [vmem:[#allocation5 + $0x140] sm:$0xf]
        %v425 = vld [vmem:[#allocation5 + $0x144] sm:$0xf]
        %v426 = vld [vmem:[#allocation5 + $0x148] sm:$0xf]
        %v427 = vld [vmem:[#allocation5 + $0x14c] sm:$0xf]
        %v428 = vld [vmem:[#allocation5 + $0x150] sm:$0xf]
        %v429 = vld [vmem:[#allocation5 + $0x154] sm:$0xf]
        %v430 = vld [vmem:[#allocation5 + $0x158] sm:$0xf]
        %v431 = vld [vmem:[#allocation5 + $0x15c] sm:$0xf]
        %v432 = vld [vmem:[#allocation5 + $0x160] sm:$0xf]
        %v433 = vld [vmem:[#allocation5 + $0x164] sm:$0xf]
        %v434 = vld [vmem:[#allocation5 + $0x168] sm:$0xf]
        %v435 = vld [vmem:[#allocation5 + $0x16c] sm:$0xf]
        %v436 = vld [vmem:[#allocation5 + $0x170] sm:$0xf]
        %v437 = vld [vmem:[#allocation5 + $0x174] sm:$0xf]
        %v438 = vld [vmem:[#allocation5 + $0x178] sm:$0xf]
        %v439 = vld [vmem:[#allocation5 + $0x17c] sm:$0xf]
        %v440 = vld [vmem:[#allocation5 + $0x180] sm:$0xf]
        %v441 = vld [vmem:[#allocation5 + $0x184] sm:$0xf]
        %v442 = vld [vmem:[#allocation5 + $0x188] sm:$0xf]
        %v443 = vld [vmem:[#allocation5 + $0x18c] sm:$0xf]
        %v444 = vld [vmem:[#allocation5 + $0x190] sm:$0xf]
        %v445 = vld [vmem:[#allocation5 + $0x194] sm:$0xf]
        %v446 = vld [vmem:[#allocation5 + $0x198] sm:$0xf]
        %v447 = vld [vmem:[#allocation5 + $0x19c] sm:$0xf]
        %v448 = vld [vmem:[#allocation5 + $0x1a0] sm:$0xf]
        %v449 = vld [vmem:[#allocation5 + $0x1a4] sm:$0xf]
        %v450 = vld [vmem:[#allocation5 + $0x1a8] sm:$0xf]
        %v451 = vld [vmem:[#allocation5 + $0x1ac] sm:$0xf]
        %v452 = vld [vmem:[#allocation5 + $0x1b0] sm:$0xf]
        %v453 = vld [vmem:[#allocation5 + $0x1b4] sm:$0xf]
        %v454 = vld [vmem:[#allocation5 + $0x1b8] sm:$0xf]
        %v455 = vld [vmem:[#allocation5 + $0x1bc] sm:$0xf]
        %v456 = vld [vmem:[#allocation5 + $0x1c0] sm:$0xf]
        %v457 = vld [vmem:[#allocation5 + $0x1c4] sm:$0xf]
        %v458 = vld [vmem:[#allocation5 + $0x1c8] sm:$0xf]
        %v459 = vld [vmem:[#allocation5 + $0x1cc] sm:$0xf]
        %v460 = vld [vmem:[#allocation5 + $0x1d0] sm:$0xf]
        %v461 = vld [vmem:[#allocation5 + $0x1d4] sm:$0xf]
        %v462 = vld [vmem:[#allocation5 + $0x1d8] sm:$0xf]
        %v463 = vld [vmem:[#allocation5 + $0x1dc] sm:$0xf]
        %v464 = vld [vmem:[#allocation5 + $0x1e0] sm:$0xf]
        %v465 = vld [vmem:[#allocation5 + $0x1e4] sm:$0xf]
        %v466 = vld [vmem:[#allocation5 + $0x1e8] sm:$0xf]
        %v467 = vld [vmem:[#allocation5 + $0x1ec] sm:$0xf]
        %v468 = vld [vmem:[#allocation5 + $0x1f0] sm:$0xf]
        %v469 = vld [vmem:[#allocation5 + $0x1f4] sm:$0xf]
        %v470 = vld [vmem:[#allocation5 + $0x1f8] sm:$0xf]
        %v471 = vld [vmem:[#allocation5 + $0x1fc] sm:$0xf]
        %v472 = vld [vmem:[#allocation5 + $0x200] sm:$0xf]
        %v473 = vld [vmem:[#allocation5 + $0x204] sm:$0xf]
        %v474 = vld [vmem:[#allocation5 + $0x208] sm:$0xf]
        %v475 = vld [vmem:[#allocation5 + $0x20c] sm:$0xf]
        %v476 = vld [vmem:[#allocation5 + $0x210] sm:$0xf]
        %v477 = vld [vmem:[#allocation5 + $0x214] sm:$0xf]
        %v478 = vld [vmem:[#allocation5 + $0x218] sm:$0xf]
        %v479 = vld [vmem:[#allocation5 + $0x21c] sm:$0xf]
        %v480 = vld [vmem:[#allocation5 + $0x220] sm:$0xf]
        %v481 = vld [vmem:[#allocation5 + $0x224] sm:$0xf]
        %v482 = vld [vmem:[#allocation5 + $0x228] sm:$0xf]
        %v483 = vld [vmem:[#allocation5 + $0x22c] sm:$0xf]
        %v484 = vld [vmem:[#allocation5 + $0x230] sm:$0xf]
        %v485 = vld [vmem:[#allocation5 + $0x234] sm:$0xf]
        %v486 = vld [vmem:[#allocation5 + $0x238] sm:$0xf]
        %v487 = vld [vmem:[#allocation5 + $0x23c] sm:$0xf]
        %v648 = vunpack.c.l.b16 %v184
        %v649 = vunpack.c.h.b16 %v184
        %v650 = vunpack.c.l.b16 %v185
        %v651 = vunpack.c.h.b16 %v185
        %v652 = vunpack.c.l.b16 %v186
        %v653 = vunpack.c.h.b16 %v186
        %v654 = vunpack.c.l.b16 %v187
        %v655 = vunpack.c.h.b16 %v187
        %v656 = vunpack.c.l.b16 %v188
        %v657 = vunpack.c.l.b16 %v189
        %v658 = vunpack.c.h.b16 %v189
        %v659 = vunpack.c.l.b16 %v190
        %v660 = vunpack.c.h.b16 %v190
        %v661 = vunpack.c.l.b16 %v191
        %v662 = vunpack.c.h.b16 %v191
        %v663 = vunpack.c.l.b16 %v192
        %v664 = vunpack.c.h.b16 %v192
        %v665 = vunpack.c.l.b16 %v193
        %v666 = vunpack.c.l.b16 %v194
        %v667 = vunpack.c.h.b16 %v194
        %v668 = vunpack.c.l.b16 %v195
        %v669 = vunpack.c.h.b16 %v195
        %v670 = vunpack.c.l.b16 %v196
        %v671 = vunpack.c.h.b16 %v196
        %v672 = vunpack.c.l.b16 %v197
        %v673 = vunpack.c.h.b16 %v197
        %v674 = vunpack.c.l.b16 %v198
        %v675 = vunpack.c.l.b16 %v199
        %v676 = vunpack.c.h.b16 %v199
        %v677 = vunpack.c.l.b16 %v200
        %v678 = vunpack.c.h.b16 %v200
        %v679 = vunpack.c.l.b16 %v201
        %v680 = vunpack.c.h.b16 %v201
        %v681 = vunpack.c.l.b16 %v202
        %v682 = vunpack.c.h.b16 %v202
        %v683 = vunpack.c.l.b16 %v203
        %v684 = vunpack.c.l.b16 %v204
        %v685 = vunpack.c.h.b16 %v204
        %v686 = vunpack.c.l.b16 %v205
        %v687 = vunpack.c.h.b16 %v205
        %v688 = vunpack.c.l.b16 %v206
        %v689 = vunpack.c.h.b16 %v206
        %v690 = vunpack.c.l.b16 %v207
        %v691 = vunpack.c.h.b16 %v207
        %v692 = vunpack.c.l.b16 %v208
        %v693 = vunpack.c.l.b16 %v209
        %v694 = vunpack.c.h.b16 %v209
        %v695 = vunpack.c.l.b16 %v210
        %v696 = vunpack.c.h.b16 %v210
        %v697 = vunpack.c.l.b16 %v211
        %v698 = vunpack.c.h.b16 %v211
        %v699 = vunpack.c.l.b16 %v212
        %v700 = vunpack.c.h.b16 %v212
        %v701 = vunpack.c.l.b16 %v213
        %v702 = vunpack.c.l.b16 %v214
        %v703 = vunpack.c.h.b16 %v214
        %v704 = vunpack.c.l.b16 %v215
        %v705 = vunpack.c.h.b16 %v215
        %v706 = vunpack.c.l.b16 %v216
        %v707 = vunpack.c.h.b16 %v216
        %v708 = vunpack.c.l.b16 %v217
        %v709 = vunpack.c.h.b16 %v217
        %v710 = vunpack.c.l.b16 %v218
        %v711 = vunpack.c.l.b16 %v219
        %v712 = vunpack.c.h.b16 %v219
        %v713 = vunpack.c.l.b16 %v220
        %v714 = vunpack.c.h.b16 %v220
        %v715 = vunpack.c.l.b16 %v221
        %v716 = vunpack.c.h.b16 %v221
        %v717 = vunpack.c.l.b16 %v222
        %v718 = vunpack.c.h.b16 %v222
        %v719 = vunpack.c.l.b16 %v223
        %v720 = vunpack.c.l.b16 %v224
        %v721 = vunpack.c.h.b16 %v224
        %v722 = vunpack.c.l.b16 %v225
        %v723 = vunpack.c.h.b16 %v225
        %v724 = vunpack.c.l.b16 %v226
        %v725 = vunpack.c.h.b16 %v226
        %v726 = vunpack.c.l.b16 %v227
        %v727 = vunpack.c.h.b16 %v227
        %v728 = vunpack.c.l.b16 %v228
        %v729 = vunpack.c.l.b16 %v229
        %v730 = vunpack.c.h.b16 %v229
        %v731 = vunpack.c.l.b16 %v230
        %v732 = vunpack.c.h.b16 %v230
        %v733 = vunpack.c.l.b16 %v231
        %v734 = vunpack.c.h.b16 %v231
        %v735 = vunpack.c.l.b16 %v232
        %v736 = vunpack.c.h.b16 %v232
        %v737 = vunpack.c.l.b16 %v233
        %v738 = vunpack.c.l.b16 %v234
        %v739 = vunpack.c.h.b16 %v234
        %v740 = vunpack.c.l.b16 %v235
        %v741 = vunpack.c.h.b16 %v235
        %v742 = vunpack.c.l.b16 %v236
        %v743 = vunpack.c.h.b16 %v236
        %v744 = vunpack.c.l.b16 %v237
        %v745 = vunpack.c.h.b16 %v237
        %v746 = vunpack.c.l.b16 %v238
        %v747 = vunpack.c.l.b16 %v239
        %v748 = vunpack.c.h.b16 %v239
        %v749 = vunpack.c.l.b16 %v240
        %v750 = vunpack.c.h.b16 %v240
        %v751 = vunpack.c.l.b16 %v241
        %v752 = vunpack.c.h.b16 %v241
        %v753 = vunpack.c.l.b16 %v242
        %v754 = vunpack.c.h.b16 %v242
        %v755 = vunpack.c.l.b16 %v243
        %v756 = vunpack.c.l.b16 %v244
        %v757 = vunpack.c.h.b16 %v244
        %v758 = vunpack.c.l.b16 %v245
        %v759 = vunpack.c.h.b16 %v245
        %v760 = vunpack.c.l.b16 %v246
        %v761 = vunpack.c.h.b16 %v246
        %v762 = vunpack.c.l.b16 %v247
        %v763 = vunpack.c.h.b16 %v247
        %v764 = vunpack.c.l.b16 %v248
        %v765 = vunpack.c.l.b16 %v249
        %v766 = vunpack.c.h.b16 %v249
        %v767 = vunpack.c.l.b16 %v250
        %v768 = vunpack.c.h.b16 %v250
        %v769 = vunpack.c.l.b16 %v251
        %v770 = vunpack.c.h.b16 %v251
        %v771 = vunpack.c.l.b16 %v252
        %v772 = vunpack.c.h.b16 %v252
        %v773 = vunpack.c.l.b16 %v253
        %v774 = vunpack.c.l.b16 %v254
        %v775 = vunpack.c.h.b16 %v254
        %v776 = vunpack.c.l.b16 %v255
        %v777 = vunpack.c.h.b16 %v255
        %v778 = vunpack.c.l.b16 %v256
        %v779 = vunpack.c.h.b16 %v256
        %v780 = vunpack.c.l.b16 %v257
        %v781 = vunpack.c.h.b16 %v257
        %v782 = vunpack.c.l.b16 %v258
        %v783 = vunpack.c.l.b16 %v259
        %v784 = vunpack.c.h.b16 %v259
        %v785 = vunpack.c.l.b16 %v260
        %v786 = vunpack.c.h.b16 %v260
        %v787 = vunpack.c.l.b16 %v261
        %v788 = vunpack.c.h.b16 %v261
        %v789 = vunpack.c.l.b16 %v262
        %v790 = vunpack.c.h.b16 %v262
        %v791 = vunpack.c.l.b16 %v263
        %v792 = vunpack.c.l.b16 %v264
        %v793 = vunpack.c.h.b16 %v264
        %v794 = vunpack.c.l.b16 %v265
        %v795 = vunpack.c.h.b16 %v265
        %v796 = vunpack.c.l.b16 %v266
        %v797 = vunpack.c.h.b16 %v266
        %v798 = vunpack.c.l.b16 %v267
        %v799 = vunpack.c.h.b16 %v267
        %v800 = vunpack.c.l.b16 %v268
        %v801 = vunpack.c.l.b16 %v269
        %v802 = vunpack.c.h.b16 %v269
        %v803 = vunpack.c.l.b16 %v270
        %v804 = vunpack.c.h.b16 %v270
        %v805 = vunpack.c.l.b16 %v271
        %v806 = vunpack.c.h.b16 %v271
        %v807 = vunpack.c.l.b16 %v272
        %v808 = vunpack.c.h.b16 %v272
        %v809 = vunpack.c.l.b16 %v273
        %v810 = vunpack.c.l.b16 %v274
        %v811 = vunpack.c.h.b16 %v274
        %v812 = vunpack.c.l.b16 %v275
        %v813 = vunpack.c.h.b16 %v275
        %v814 = vunpack.c.l.b16 %v276
        %v815 = vunpack.c.h.b16 %v276
        %v816 = vunpack.c.l.b16 %v277
        %v817 = vunpack.c.h.b16 %v277
        %v818 = vunpack.c.l.b16 %v278
        %v819 = vunpack.c.l.b16 %v279
        %v820 = vunpack.c.h.b16 %v279
        %v821 = vunpack.c.l.b16 %v280
        %v822 = vunpack.c.h.b16 %v280
        %v823 = vunpack.c.l.b16 %v281
        %v824 = vunpack.c.h.b16 %v281
        %v825 = vunpack.c.l.b16 %v282
        %v826 = vunpack.c.h.b16 %v282
        %v827 = vunpack.c.l.b16 %v283
        %v828 = vunpack.c.l.b16 %v284
        %v829 = vunpack.c.h.b16 %v284
        %v830 = vunpack.c.l.b16 %v285
        %v831 = vunpack.c.h.b16 %v285
        %v832 = vunpack.c.l.b16 %v286
        %v833 = vunpack.c.h.b16 %v286
        %v834 = vunpack.c.l.b16 %v287
        %v835 = vunpack.c.h.b16 %v287
        %v836 = vunpack.c.l.b16 %v288
        %v837 = vunpack.c.l.b16 %v289
        %v838 = vunpack.c.h.b16 %v289
        %v839 = vunpack.c.l.b16 %v290
        %v840 = vunpack.c.h.b16 %v290
        %v841 = vunpack.c.l.b16 %v291
        %v842 = vunpack.c.h.b16 %v291
        %v843 = vunpack.c.l.b16 %v292
        %v844 = vunpack.c.h.b16 %v292
        %v845 = vunpack.c.l.b16 %v293
        %v846 = vunpack.c.l.b16 %v294
        %v847 = vunpack.c.h.b16 %v294
        %v848 = vunpack.c.l.b16 %v295
        %v849 = vunpack.c.h.b16 %v295
        %v850 = vunpack.c.l.b16 %v296
        %v851 = vunpack.c.h.b16 %v296
        %v852 = vunpack.c.l.b16 %v297
        %v853 = vunpack.c.h.b16 %v297
        %v854 = vunpack.c.l.b16 %v298
        %v855 = vunpack.c.l.b16 %v299
        %v856 = vunpack.c.h.b16 %v299
        %v857 = vunpack.c.l.b16 %v300
        %v858 = vunpack.c.h.b16 %v300
        %v859 = vunpack.c.l.b16 %v301
        %v860 = vunpack.c.h.b16 %v301
        %v861 = vunpack.c.l.b16 %v302
        %v862 = vunpack.c.h.b16 %v302
        %v863 = vunpack.c.l.b16 %v303
        %v864 = vunpack.c.l.b16 %v304
        %v865 = vunpack.c.h.b16 %v304
        %v866 = vunpack.c.l.b16 %v305
        %v867 = vunpack.c.h.b16 %v305
        %v868 = vunpack.c.l.b16 %v306
        %v869 = vunpack.c.h.b16 %v306
        %v870 = vunpack.c.l.b16 %v307
        %v871 = vunpack.c.h.b16 %v307
        %v872 = vunpack.c.l.b16 %v308
        %v873 = vunpack.c.l.b16 %v309
        %v874 = vunpack.c.h.b16 %v309
        %v875 = vunpack.c.l.b16 %v310
        %v876 = vunpack.c.h.b16 %v310
        %v877 = vunpack.c.l.b16 %v311
        %v878 = vunpack.c.h.b16 %v311
        %v879 = vunpack.c.l.b16 %v312
        %v880 = vunpack.c.h.b16 %v312
        %v881 = vunpack.c.l.b16 %v313
        %v882 = vunpack.c.l.b16 %v314
        %v883 = vunpack.c.h.b16 %v314
        %v884 = vunpack.c.l.b16 %v315
        %v885 = vunpack.c.h.b16 %v315
        %v886 = vunpack.c.l.b16 %v316
        %v887 = vunpack.c.h.b16 %v316
        %v888 = vunpack.c.l.b16 %v317
        %v889 = vunpack.c.h.b16 %v317
        %v890 = vunpack.c.l.b16 %v318
        %v891 = vunpack.c.l.b16 %v319
        %v892 = vunpack.c.h.b16 %v319
        %v893 = vunpack.c.l.b16 %v320
        %v894 = vunpack.c.h.b16 %v320
        %v895 = vunpack.c.l.b16 %v321
        %v896 = vunpack.c.h.b16 %v321
        %v897 = vunpack.c.l.b16 %v322
        %v898 = vunpack.c.h.b16 %v322
        %v899 = vunpack.c.l.b16 %v323
        %v900 = vunpack.c.l.b16 %v324
        %v901 = vunpack.c.h.b16 %v324
        %v902 = vunpack.c.l.b16 %v325
        %v903 = vunpack.c.h.b16 %v325
        %v904 = vunpack.c.l.b16 %v326
        %v905 = vunpack.c.h.b16 %v326
        %v906 = vunpack.c.l.b16 %v327
        %v907 = vunpack.c.h.b16 %v327
        %v908 = vunpack.c.l.b16 %v328
        %v909 = vunpack.c.l.b16 %v329
        %v910 = vunpack.c.h.b16 %v329
        %v911 = vunpack.c.l.b16 %v330
        %v912 = vunpack.c.h.b16 %v330
        %v913 = vunpack.c.l.b16 %v331
        %v914 = vunpack.c.h.b16 %v331
        %v915 = vunpack.c.l.b16 %v332
        %v916 = vunpack.c.h.b16 %v332
        %v917 = vunpack.c.l.b16 %v333
        %v918 = vunpack.c.l.b16 %v334
        %v919 = vunpack.c.h.b16 %v334
        %v920 = vunpack.c.l.b16 %v335
        %v921 = vunpack.c.h.b16 %v335
        %v922 = vunpack.c.l.b16 %v336
        %v923 = vunpack.c.h.b16 %v336
        %v924 = vunpack.c.l.b16 %v337
        %v925 = vunpack.c.h.b16 %v337
        %v926 = vunpack.c.l.b16 %v338
        %v927 = vunpack.c.l.b16 %v339
        %v928 = vunpack.c.h.b16 %v339
        %v929 = vunpack.c.l.b16 %v340
        %v930 = vunpack.c.h.b16 %v340
        %v931 = vunpack.c.l.b16 %v341
        %v932 = vunpack.c.h.b16 %v341
        %v933 = vunpack.c.l.b16 %v342
        %v934 = vunpack.c.h.b16 %v342
        %v935 = vunpack.c.l.b16 %v343
        %v936 = vpack.c.b16 %v657, %v648
        %v937 = vpack.c.b16 %v658, %v649
        %v938 = vpack.c.b16 %v659, %v650
        %v939 = vpack.c.b16 %v660, %v651
        %v940 = vpack.c.b16 %v661, %v652
        %v941 = vpack.c.b16 %v662, %v653
        %v942 = vpack.c.b16 %v663, %v654
        %v943 = vpack.c.b16 %v664, %v655
        %v944 = vpack.c.b16 %v665, %v656
        %v945 = vpack.c.b16 %v675, %v666
        %v946 = vpack.c.b16 %v676, %v667
        %v947 = vpack.c.b16 %v677, %v668
        %v948 = vpack.c.b16 %v678, %v669
        %v949 = vpack.c.b16 %v679, %v670
        %v950 = vpack.c.b16 %v680, %v671
        %v951 = vpack.c.b16 %v681, %v672
        %v952 = vpack.c.b16 %v682, %v673
        %v953 = vpack.c.b16 %v683, %v674
        %v954 = vpack.c.b16 %v693, %v684
        %v955 = vpack.c.b16 %v694, %v685
        %v956 = vpack.c.b16 %v695, %v686
        %v957 = vpack.c.b16 %v696, %v687
        %v958 = vpack.c.b16 %v697, %v688
        %v959 = vpack.c.b16 %v698, %v689
        %v960 = vpack.c.b16 %v699, %v690
        %v961 = vpack.c.b16 %v700, %v691
        %v962 = vpack.c.b16 %v701, %v692
        %v963 = vpack.c.b16 %v711, %v702
        %v964 = vpack.c.b16 %v712, %v703
        %v965 = vpack.c.b16 %v713, %v704
        %v966 = vpack.c.b16 %v714, %v705
        %v967 = vpack.c.b16 %v715, %v706
        %v968 = vpack.c.b16 %v716, %v707
        %v969 = vpack.c.b16 %v717, %v708
        %v970 = vpack.c.b16 %v718, %v709
        %v971 = vpack.c.b16 %v719, %v710
        %v972 = vpack.c.b16 %v729, %v720
        %v973 = vpack.c.b16 %v730, %v721
        %v974 = vpack.c.b16 %v731, %v722
        %v975 = vpack.c.b16 %v732, %v723
        %v976 = vpack.c.b16 %v733, %v724
        %v977 = vpack.c.b16 %v734, %v725
        %v978 = vpack.c.b16 %v735, %v726
        %v979 = vpack.c.b16 %v736, %v727
        %v980 = vpack.c.b16 %v737, %v728
        %v981 = vpack.c.b16 %v747, %v738
        %v982 = vpack.c.b16 %v748, %v739
        %v983 = vpack.c.b16 %v749, %v740
        %v984 = vpack.c.b16 %v750, %v741
        %v985 = vpack.c.b16 %v751, %v742
        %v986 = vpack.c.b16 %v752, %v743
        %v987 = vpack.c.b16 %v753, %v744
        %v988 = vpack.c.b16 %v754, %v745
        %v989 = vpack.c.b16 %v755, %v746
        %v990 = vpack.c.b16 %v765, %v756
        %v991 = vpack.c.b16 %v766, %v757
        %v992 = vpack.c.b16 %v767, %v758
        %v993 = vpack.c.b16 %v768, %v759
        %v994 = vpack.c.b16 %v769, %v760
        %v995 = vpack.c.b16 %v770, %v761
        %v996 = vpack.c.b16 %v771, %v762
        %v997 = vpack.c.b16 %v772, %v763
        %v998 = vpack.c.b16 %v773, %v764
        %v999 = vpack.c.b16 %v783, %v774
        %v1000 = vpack.c.b16 %v784, %v775
        %v1001 = vpack.c.b16 %v785, %v776
        %v1002 = vpack.c.b16 %v786, %v777
        %v1003 = vpack.c.b16 %v787, %v778
        %v1004 = vpack.c.b16 %v788, %v779
        %v1005 = vpack.c.b16 %v789, %v780
        %v1006 = vpack.c.b16 %v790, %v781
        %v1007 = vpack.c.b16 %v791, %v782
        %v1008 = vpack.c.b16 %v801, %v792
        %v1009 = vpack.c.b16 %v802, %v793
        %v1010 = vpack.c.b16 %v803, %v794
        %v1011 = vpack.c.b16 %v804, %v795
        %v1012 = vpack.c.b16 %v805, %v796
        %v1013 = vpack.c.b16 %v806, %v797
        %v1014 = vpack.c.b16 %v807, %v798
        %v1015 = vpack.c.b16 %v808, %v799
        %v1016 = vpack.c.b16 %v809, %v800
        %v1017 = vpack.c.b16 %v819, %v810
        %v1018 = vpack.c.b16 %v820, %v811
        %v1019 = vpack.c.b16 %v821, %v812
        %v1020 = vpack.c.b16 %v822, %v813
        %v1021 = vpack.c.b16 %v823, %v814
        %v1022 = vpack.c.b16 %v824, %v815
        %v1023 = vpack.c.b16 %v825, %v816
        %v1024 = vpack.c.b16 %v826, %v817
        %v1025 = vpack.c.b16 %v827, %v818
        %v1026 = vpack.c.b16 %v837, %v828
        %v1027 = vpack.c.b16 %v838, %v829
        %v1028 = vpack.c.b16 %v839, %v830
        %v1029 = vpack.c.b16 %v840, %v831
        %v1030 = vpack.c.b16 %v841, %v832
        %v1031 = vpack.c.b16 %v842, %v833
        %v1032 = vpack.c.b16 %v843, %v834
        %v1033 = vpack.c.b16 %v844, %v835
        %v1034 = vpack.c.b16 %v845, %v836
        %v1035 = vpack.c.b16 %v855, %v846
        %v1036 = vpack.c.b16 %v856, %v847
        %v1037 = vpack.c.b16 %v857, %v848
        %v1038 = vpack.c.b16 %v858, %v849
        %v1039 = vpack.c.b16 %v859, %v850
        %v1040 = vpack.c.b16 %v860, %v851
        %v1041 = vpack.c.b16 %v861, %v852
        %v1042 = vpack.c.b16 %v862, %v853
        %v1043 = vpack.c.b16 %v863, %v854
        %v1044 = vpack.c.b16 %v873, %v864
        %v1045 = vpack.c.b16 %v874, %v865
        %v1046 = vpack.c.b16 %v875, %v866
        %v1047 = vpack.c.b16 %v876, %v867
        %v1048 = vpack.c.b16 %v877, %v868
        %v1049 = vpack.c.b16 %v878, %v869
        %v1050 = vpack.c.b16 %v879, %v870
        %v1051 = vpack.c.b16 %v880, %v871
        %v1052 = vpack.c.b16 %v881, %v872
        %v1053 = vpack.c.b16 %v891, %v882
        %v1054 = vpack.c.b16 %v892, %v883
        %v1055 = vpack.c.b16 %v893, %v884
        %v1056 = vpack.c.b16 %v894, %v885
        %v1057 = vpack.c.b16 %v895, %v886
        %v1058 = vpack.c.b16 %v896, %v887
        %v1059 = vpack.c.b16 %v897, %v888
        %v1060 = vpack.c.b16 %v898, %v889
        %v1061 = vpack.c.b16 %v899, %v890
        %v1062 = vpack.c.b16 %v909, %v900
        %v1063 = vpack.c.b16 %v910, %v901
        %v1064 = vpack.c.b16 %v911, %v902
        %v1065 = vpack.c.b16 %v912, %v903
        %v1066 = vpack.c.b16 %v913, %v904
        %v1067 = vpack.c.b16 %v914, %v905
        %v1068 = vpack.c.b16 %v915, %v906
        %v1069 = vpack.c.b16 %v916, %v907
        %v1070 = vpack.c.b16 %v917, %v908
        %v1071 = vpack.c.b16 %v927, %v918
        %v1072 = vpack.c.b16 %v928, %v919
        %v1073 = vpack.c.b16 %v929, %v920
        %v1074 = vpack.c.b16 %v930, %v921
        %v1075 = vpack.c.b16 %v931, %v922
        %v1076 = vpack.c.b16 %v932, %v923
        %v1077 = vpack.c.b16 %v933, %v924
        %v1078 = vpack.c.b16 %v934, %v925
        %v1079 = vpack.c.b16 %v935, %v926
        %v1368 = vunpack.c.l.b16 %v344
        %v1369 = vunpack.c.l.b16 %v345
        %v1370 = vunpack.c.l.b16 %v346
        %v1371 = vunpack.c.l.b16 %v347
        %v1372 = vunpack.c.l.b16 %v348
        %v1373 = vunpack.c.l.b16 %v349
        %v1374 = vunpack.c.l.b16 %v350
        %v1375 = vunpack.c.l.b16 %v351
        %v1376 = vunpack.c.l.b16 %v352
        %v1377 = vunpack.c.l.b16 %v353
        %v1378 = vunpack.c.l.b16 %v354
        %v1379 = vunpack.c.l.b16 %v355
        %v1380 = vunpack.c.l.b16 %v356
        %v1381 = vunpack.c.l.b16 %v357
        %v1382 = vunpack.c.l.b16 %v358
        %v1383 = vunpack.c.l.b16 %v359
        %v1384 = vunpack.c.l.b16 %v360
        %v1385 = vunpack.c.l.b16 %v361
        %v1386 = vunpack.c.l.b16 %v362
        %v1387 = vunpack.c.l.b16 %v363
        %v1388 = vunpack.c.l.b16 %v364
        %v1389 = vunpack.c.l.b16 %v365
        %v1390 = vunpack.c.l.b16 %v366
        %v1391 = vunpack.c.l.b16 %v367
        %v1392 = vunpack.c.l.b16 %v368
        %v1393 = vunpack.c.l.b16 %v369
        %v1394 = vunpack.c.l.b16 %v370
        %v1395 = vunpack.c.l.b16 %v371
        %v1396 = vunpack.c.l.b16 %v372
        %v1397 = vunpack.c.l.b16 %v373
        %v1398 = vunpack.c.l.b16 %v374
        %v1399 = vunpack.c.l.b16 %v375
        %v1400 = vunpack.c.l.b16 %v376
        %v1401 = vunpack.c.l.b16 %v377
        %v1402 = vunpack.c.l.b16 %v378
        %v1403 = vunpack.c.l.b16 %v379
        %v1404 = vunpack.c.l.b16 %v380
        %v1405 = vunpack.c.l.b16 %v381
        %v1406 = vunpack.c.l.b16 %v382
        %v1407 = vunpack.c.l.b16 %v383
        %v1408 = vunpack.c.l.b16 %v384
        %v1409 = vunpack.c.l.b16 %v385
        %v1410 = vunpack.c.l.b16 %v386
        %v1411 = vunpack.c.l.b16 %v387
        %v1412 = vunpack.c.l.b16 %v388
        %v1413 = vunpack.c.l.b16 %v389
        %v1414 = vunpack.c.l.b16 %v390
        %v1415 = vunpack.c.l.b16 %v391
        %v1416 = vunpack.c.l.b16 %v392
        %v1417 = vunpack.c.l.b16 %v393
        %v1418 = vunpack.c.l.b16 %v394
        %v1419 = vunpack.c.l.b16 %v395
        %v1420 = vunpack.c.l.b16 %v396
        %v1421 = vunpack.c.l.b16 %v397
        %v1422 = vunpack.c.l.b16 %v398
        %v1423 = vunpack.c.l.b16 %v399
        %v1424 = vunpack.c.l.b16 %v400
        %v1425 = vunpack.c.l.b16 %v401
        %v1426 = vunpack.c.l.b16 %v402
        %v1427 = vunpack.c.l.b16 %v403
        %v1428 = vunpack.c.l.b16 %v404
        %v1429 = vunpack.c.l.b16 %v405
        %v1430 = vunpack.c.l.b16 %v406
        %v1431 = vunpack.c.l.b16 %v407
        %v1432 = vunpack.c.l.b16 %v408
        %v1433 = vunpack.c.l.b16 %v409
        %v1434 = vunpack.c.l.b16 %v410
        %v1435 = vunpack.c.l.b16 %v411
        %v1436 = vunpack.c.l.b16 %v412
        %v1437 = vunpack.c.l.b16 %v413
        %v1438 = vunpack.c.l.b16 %v414
        %v1439 = vunpack.c.l.b16 %v415
        %v1440 = vunpack.c.l.b16 %v416
        %v1441 = vunpack.c.l.b16 %v417
        %v1442 = vunpack.c.l.b16 %v418
        %v1443 = vunpack.c.l.b16 %v419
        %v1444 = vunpack.c.l.b16 %v420
        %v1445 = vunpack.c.l.b16 %v421
        %v1446 = vunpack.c.l.b16 %v422
        %v1447 = vunpack.c.l.b16 %v423
        %v1448 = vunpack.c.l.b16 %v424
        %v1449 = vunpack.c.l.b16 %v425
        %v1450 = vunpack.c.l.b16 %v426
        %v1451 = vunpack.c.l.b16 %v427
        %v1452 = vunpack.c.l.b16 %v428
        %v1453 = vunpack.c.l.b16 %v429
        %v1454 = vunpack.c.l.b16 %v430
        %v1455 = vunpack.c.l.b16 %v431
        %v1456 = vunpack.c.l.b16 %v432
        %v1457 = vunpack.c.l.b16 %v433
        %v1458 = vunpack.c.l.b16 %v434
        %v1459 = vunpack.c.l.b16 %v435
        %v1460 = vunpack.c.l.b16 %v436
        %v1461 = vunpack.c.l.b16 %v437
        %v1462 = vunpack.c.l.b16 %v438
        %v1463 = vunpack.c.l.b16 %v439
        %v1464 = vunpack.c.l.b16 %v440
        %v1465 = vunpack.c.l.b16 %v441
        %v1466 = vunpack.c.l.b16 %v442
        %v1467 = vunpack.c.l.b16 %v443
        %v1468 = vunpack.c.l.b16 %v444
        %v1469 = vunpack.c.l.b16 %v445
        %v1470 = vunpack.c.l.b16 %v446
        %v1471 = vunpack.c.l.b16 %v447
        %v1472 = vunpack.c.l.b16 %v448
        %v1473 = vunpack.c.l.b16 %v449
        %v1474 = vunpack.c.l.b16 %v450
        %v1475 = vunpack.c.l.b16 %v451
        %v1476 = vunpack.c.l.b16 %v452
        %v1477 = vunpack.c.l.b16 %v453
        %v1478 = vunpack.c.l.b16 %v454
        %v1479 = vunpack.c.l.b16 %v455
        %v1480 = vunpack.c.l.b16 %v456
        %v1481 = vunpack.c.l.b16 %v457
        %v1482 = vunpack.c.l.b16 %v458
        %v1483 = vunpack.c.l.b16 %v459
        %v1484 = vunpack.c.l.b16 %v460
        %v1485 = vunpack.c.l.b16 %v461
        %v1486 = vunpack.c.l.b16 %v462
        %v1487 = vunpack.c.l.b16 %v463
        %v1488 = vunpack.c.l.b16 %v464
        %v1489 = vunpack.c.l.b16 %v465
        %v1490 = vunpack.c.l.b16 %v466
        %v1491 = vunpack.c.l.b16 %v467
        %v1492 = vunpack.c.l.b16 %v468
        %v1493 = vunpack.c.l.b16 %v469
        %v1494 = vunpack.c.l.b16 %v470
        %v1495 = vunpack.c.l.b16 %v471
        %v1496 = vunpack.c.l.b16 %v472
        %v1497 = vunpack.c.l.b16 %v473
        %v1498 = vunpack.c.l.b16 %v474
        %v1499 = vunpack.c.l.b16 %v475
        %v1500 = vunpack.c.l.b16 %v476
        %v1501 = vunpack.c.l.b16 %v477
        %v1502 = vunpack.c.l.b16 %v478
        %v1503 = vunpack.c.l.b16 %v479
        %v1504 = vunpack.c.l.b16 %v480
        %v1505 = vunpack.c.l.b16 %v481
        %v1506 = vunpack.c.l.b16 %v482
        %v1507 = vunpack.c.l.b16 %v483
        %v1508 = vunpack.c.l.b16 %v484
        %v1509 = vunpack.c.l.b16 %v485
        %v1510 = vunpack.c.l.b16 %v486
        %v1511 = vunpack.c.l.b16 %v487
        %v1512 = vpack.c.b16 %v1369, %v1368
        %v1513 = vpack.c.b16 %v1371, %v1370
        %v1514 = vpack.c.b16 %v1373, %v1372
        %v1515 = vpack.c.b16 %v1375, %v1374
        %v1516 = vpack.c.b16 %v1377, %v1376
        %v1517 = vpack.c.b16 %v1379, %v1378
        %v1518 = vpack.c.b16 %v1381, %v1380
        %v1519 = vpack.c.b16 %v1383, %v1382
        %v1520 = vpack.c.b16 %v1385, %v1384
        %v1521 = vpack.c.b16 %v1387, %v1386
        %v1522 = vpack.c.b16 %v1389, %v1388
        %v1523 = vpack.c.b16 %v1391, %v1390
        %v1524 = vpack.c.b16 %v1393, %v1392
        %v1525 = vpack.c.b16 %v1395, %v1394
        %v1526 = vpack.c.b16 %v1397, %v1396
        %v1527 = vpack.c.b16 %v1399, %v1398
        %v1528 = vpack.c.b16 %v1401, %v1400
        %v1529 = vpack.c.b16 %v1403, %v1402
        %v1530 = vpack.c.b16 %v1405, %v1404
        %v1531 = vpack.c.b16 %v1407, %v1406
        %v1532 = vpack.c.b16 %v1409, %v1408
        %v1533 = vpack.c.b16 %v1411, %v1410
        %v1534 = vpack.c.b16 %v1413, %v1412
        %v1535 = vpack.c.b16 %v1415, %v1414
        %v1536 = vpack.c.b16 %v1417, %v1416
        %v1537 = vpack.c.b16 %v1419, %v1418
        %v1538 = vpack.c.b16 %v1421, %v1420
        %v1539 = vpack.c.b16 %v1423, %v1422
        %v1540 = vpack.c.b16 %v1425, %v1424
        %v1541 = vpack.c.b16 %v1427, %v1426
        %v1542 = vpack.c.b16 %v1429, %v1428
        %v1543 = vpack.c.b16 %v1431, %v1430
        %v1544 = vpack.c.b16 %v1433, %v1432
        %v1545 = vpack.c.b16 %v1435, %v1434
        %v1546 = vpack.c.b16 %v1437, %v1436
        %v1547 = vpack.c.b16 %v1439, %v1438
        %v1548 = vpack.c.b16 %v1441, %v1440
        %v1549 = vpack.c.b16 %v1443, %v1442
        %v1550 = vpack.c.b16 %v1445, %v1444
        %v1551 = vpack.c.b16 %v1447, %v1446
        %v1552 = vpack.c.b16 %v1449, %v1448
        %v1553 = vpack.c.b16 %v1451, %v1450
        %v1554 = vpack.c.b16 %v1453, %v1452
        %v1555 = vpack.c.b16 %v1455, %v1454
        %v1556 = vpack.c.b16 %v1457, %v1456
        %v1557 = vpack.c.b16 %v1459, %v1458
        %v1558 = vpack.c.b16 %v1461, %v1460
        %v1559 = vpack.c.b16 %v1463, %v1462
        %v1560 = vpack.c.b16 %v1465, %v1464
        %v1561 = vpack.c.b16 %v1467, %v1466
        %v1562 = vpack.c.b16 %v1469, %v1468
        %v1563 = vpack.c.b16 %v1471, %v1470
        %v1564 = vpack.c.b16 %v1473, %v1472
        %v1565 = vpack.c.b16 %v1475, %v1474
        %v1566 = vpack.c.b16 %v1477, %v1476
        %v1567 = vpack.c.b16 %v1479, %v1478
        %v1568 = vpack.c.b16 %v1481, %v1480
        %v1569 = vpack.c.b16 %v1483, %v1482
        %v1570 = vpack.c.b16 %v1485, %v1484
        %v1571 = vpack.c.b16 %v1487, %v1486
        %v1572 = vpack.c.b16 %v1489, %v1488
        %v1573 = vpack.c.b16 %v1491, %v1490
        %v1574 = vpack.c.b16 %v1493, %v1492
        %v1575 = vpack.c.b16 %v1495, %v1494
        %v1576 = vpack.c.b16 %v1497, %v1496
        %v1577 = vpack.c.b16 %v1499, %v1498
        %v1578 = vpack.c.b16 %v1501, %v1500
        %v1579 = vpack.c.b16 %v1503, %v1502
        %v1580 = vpack.c.b16 %v1505, %v1504
        %v1581 = vpack.c.b16 %v1507, %v1506
        %v1582 = vpack.c.b16 %v1509, %v1508
        %v1583 = vpack.c.b16 %v1511, %v1510
        %1656 = vmatpush.bf16.msra.mxu0 %v1519
        %1657 = vmatpush.bf16.msra.mxu0 %v1518
        %1658 = vmatpush.bf16.msra.mxu0 %v1517
        %1659 = vmatpush.bf16.msra.mxu0 %v1516
        %1660 = vmatpush.bf16.msra.mxu0 %v1515
        %1661 = vmatpush.bf16.msra.mxu0 %v1514
        %1662 = vmatpush.bf16.msra.mxu0 %v1513
        %1663 = vmatpush.bf16.msra.mxu0 %v1512
        %1664 = vmatmul.bf16.gmra.mxu0 %v936
        %v1665 = vpop.f32.mrf.mxu0
        %v1666 = vadd.f32 0.0, %v1665
        %v1667 = vpop.f32.mrf.mxu0
        %v1668 = vadd.f32 0.0, %v1667
        %1669 = vmatmul.bf16.gmra.mxu0 %v945
        %v1670 = vpop.f32.mrf.mxu0
        %v1671 = vadd.f32 0.0, %v1670
        %v1672 = vpop.f32.mrf.mxu0
        %v1673 = vadd.f32 0.0, %v1672
        %1674 = vmatmul.bf16.gmra.mxu0 %v954
        %v1675 = vpop.f32.mrf.mxu0
        %v1676 = vadd.f32 0.0, %v1675
        %v1677 = vpop.f32.mrf.mxu0
        %v1678 = vadd.f32 0.0, %v1677
        %1679 = vmatmul.bf16.gmra.mxu0 %v963
        %v1680 = vpop.f32.mrf.mxu0
        %v1681 = vadd.f32 0.0, %v1680
        %v1682 = vpop.f32.mrf.mxu0
        %v1683 = vadd.f32 0.0, %v1682
        %1684 = vmatmul.bf16.gmra.mxu0 %v972
        %v1685 = vpop.f32.mrf.mxu0
        %v1686 = vadd.f32 0.0, %v1685
        %v1687 = vpop.f32.mrf.mxu0
        %v1688 = vadd.f32 0.0, %v1687
        %1689 = vmatmul.bf16.gmra.mxu0 %v981
        %v1690 = vpop.f32.mrf.mxu0
        %v1691 = vadd.f32 0.0, %v1690
        %v1692 = vpop.f32.mrf.mxu0
        %v1693 = vadd.f32 0.0, %v1692
        %1694 = vmatmul.bf16.gmra.mxu0 %v990
        %v1695 = vpop.f32.mrf.mxu0
        %v1696 = vadd.f32 0.0, %v1695
        %v1697 = vpop.f32.mrf.mxu0
        %v1698 = vadd.f32 0.0, %v1697
        %1699 = vmatmul.bf16.gmra.mxu0 %v999
        %v1700 = vpop.f32.mrf.mxu0
        %v1701 = vadd.f32 0.0, %v1700
        %v1702 = vpop.f32.mrf.mxu0
        %v1703 = vadd.f32 0.0, %v1702
        %1704 = vmatmul.bf16.gmra.mxu0 %v1008
        %v1705 = vpop.f32.mrf.mxu0
        %v1706 = vadd.f32 0.0, %v1705
        %v1707 = vpop.f32.mrf.mxu0
        %v1708 = vadd.f32 0.0, %v1707
        %1709 = vmatmul.bf16.gmra.mxu0 %v1017
        %v1710 = vpop.f32.mrf.mxu0
        %v1711 = vadd.f32 0.0, %v1710
        %v1712 = vpop.f32.mrf.mxu0
        %v1713 = vadd.f32 0.0, %v1712
        %1714 = vmatmul.bf16.gmra.mxu0 %v1026
        %v1715 = vpop.f32.mrf.mxu0
        %v1716 = vadd.f32 0.0, %v1715
        %v1717 = vpop.f32.mrf.mxu0
        %v1718 = vadd.f32 0.0, %v1717
        %1719 = vmatmul.bf16.gmra.mxu0 %v1035
        %v1720 = vpop.f32.mrf.mxu0
        %v1721 = vadd.f32 0.0, %v1720
        %v1722 = vpop.f32.mrf.mxu0
        %v1723 = vadd.f32 0.0, %v1722
        %1724 = vmatmul.bf16.gmra.mxu0 %v1044
        %v1725 = vpop.f32.mrf.mxu0
        %v1726 = vadd.f32 0.0, %v1725
        %v1727 = vpop.f32.mrf.mxu0
        %v1728 = vadd.f32 0.0, %v1727
        %1729 = vmatmul.bf16.gmra.mxu0 %v1053
        %v1730 = vpop.f32.mrf.mxu0
        %v1731 = vadd.f32 0.0, %v1730
        %v1732 = vpop.f32.mrf.mxu0
        %v1733 = vadd.f32 0.0, %v1732
        %1734 = vmatmul.bf16.gmra.mxu0 %v1062
        %v1735 = vpop.f32.mrf.mxu0
        %v1736 = vadd.f32 0.0, %v1735
        %v1737 = vpop.f32.mrf.mxu0
        %v1738 = vadd.f32 0.0, %v1737
        %1739 = vmatmul.bf16.gmra.mxu0 %v1071
        %v1740 = vpop.f32.mrf.mxu0
        %v1741 = vadd.f32 0.0, %v1740
        %v1742 = vpop.f32.mrf.mxu0
        %v1743 = vadd.f32 0.0, %v1742
        %1744 = vdwg.mxu0
        %1745 = vmatpush.bf16.msra.mxu0 %v1527
        %1746 = vmatpush.bf16.msra.mxu0 %v1526
        %1747 = vmatpush.bf16.msra.mxu0 %v1525
        %1748 = vmatpush.bf16.msra.mxu0 %v1524
        %1749 = vmatpush.bf16.msra.mxu0 %v1523
        %1750 = vmatpush.bf16.msra.mxu0 %v1522
        %1751 = vmatpush.bf16.msra.mxu0 %v1521
        %1752 = vmatpush.bf16.msra.mxu0 %v1520
        %1753 = vmatmul.bf16.gmra.mxu0 %v937
        %v1754 = vpop.f32.mrf.mxu0
        %v1755 = vadd.f32 %v1666, %v1754
        %v1756 = vpop.f32.mrf.mxu0
        %v1757 = vadd.f32 %v1668, %v1756
        %1758 = vmatmul.bf16.gmra.mxu0 %v946
        %v1759 = vpop.f32.mrf.mxu0
        %v1760 = vadd.f32 %v1671, %v1759
        %v1761 = vpop.f32.mrf.mxu0
        %v1762 = vadd.f32 %v1673, %v1761
        %1763 = vmatmul.bf16.gmra.mxu0 %v955
        %v1764 = vpop.f32.mrf.mxu0
        %v1765 = vadd.f32 %v1676, %v1764
        %v1766 = vpop.f32.mrf.mxu0
        %v1767 = vadd.f32 %v1678, %v1766
        %1768 = vmatmul.bf16.gmra.mxu0 %v964
        %v1769 = vpop.f32.mrf.mxu0
        %v1770 = vadd.f32 %v1681, %v1769
        %v1771 = vpop.f32.mrf.mxu0
        %v1772 = vadd.f32 %v1683, %v1771
        %1773 = vmatmul.bf16.gmra.mxu0 %v973
        %v1774 = vpop.f32.mrf.mxu0
        %v1775 = vadd.f32 %v1686, %v1774
        %v1776 = vpop.f32.mrf.mxu0
        %v1777 = vadd.f32 %v1688, %v1776
        %1778 = vmatmul.bf16.gmra.mxu0 %v982
        %v1779 = vpop.f32.mrf.mxu0
        %v1780 = vadd.f32 %v1691, %v1779
        %v1781 = vpop.f32.mrf.mxu0
        %v1782 = vadd.f32 %v1693, %v1781
        %1783 = vmatmul.bf16.gmra.mxu0 %v991
        %v1784 = vpop.f32.mrf.mxu0
        %v1785 = vadd.f32 %v1696, %v1784
        %v1786 = vpop.f32.mrf.mxu0
        %v1787 = vadd.f32 %v1698, %v1786
        %1788 = vmatmul.bf16.gmra.mxu0 %v1000
        %v1789 = vpop.f32.mrf.mxu0
        %v1790 = vadd.f32 %v1701, %v1789
        %v1791 = vpop.f32.mrf.mxu0
        %v1792 = vadd.f32 %v1703, %v1791
        %1793 = vmatmul.bf16.gmra.mxu0 %v1009
        %v1794 = vpop.f32.mrf.mxu0
        %v1795 = vadd.f32 %v1706, %v1794
        %v1796 = vpop.f32.mrf.mxu0
        %v1797 = vadd.f32 %v1708, %v1796
        %1798 = vmatmul.bf16.gmra.mxu0 %v1018
        %v1799 = vpop.f32.mrf.mxu0
        %v1800 = vadd.f32 %v1711, %v1799
        %v1801 = vpop.f32.mrf.mxu0
        %v1802 = vadd.f32 %v1713, %v1801
        %1803 = vmatmul.bf16.gmra.mxu0 %v1027
        %v1804 = vpop.f32.mrf.mxu0
        %v1805 = vadd.f32 %v1716, %v1804
        %v1806 = vpop.f32.mrf.mxu0
        %v1807 = vadd.f32 %v1718, %v1806
        %1808 = vmatmul.bf16.gmra.mxu0 %v1036
        %v1809 = vpop.f32.mrf.mxu0
        %v1810 = vadd.f32 %v1721, %v1809
        %v1811 = vpop.f32.mrf.mxu0
        %v1812 = vadd.f32 %v1723, %v1811
        %1813 = vmatmul.bf16.gmra.mxu0 %v1045
        %v1814 = vpop.f32.mrf.mxu0
        %v1815 = vadd.f32 %v1726, %v1814
        %v1816 = vpop.f32.mrf.mxu0
        %v1817 = vadd.f32 %v1728, %v1816
        %1818 = vmatmul.bf16.gmra.mxu0 %v1054
        %v1819 = vpop.f32.mrf.mxu0
        %v1820 = vadd.f32 %v1731, %v1819
        %v1821 = vpop.f32.mrf.mxu0
        %v1822 = vadd.f32 %v1733, %v1821
        %1823 = vmatmul.bf16.gmra.mxu0 %v1063
        %v1824 = vpop.f32.mrf.mxu0
        %v1825 = vadd.f32 %v1736, %v1824
        %v1826 = vpop.f32.mrf.mxu0
        %v1827 = vadd.f32 %v1738, %v1826
        %1828 = vmatmul.bf16.gmra.mxu0 %v1072
        %v1829 = vpop.f32.mrf.mxu0
        %v1830 = vadd.f32 %v1741, %v1829
        %v1831 = vpop.f32.mrf.mxu0
        %v1832 = vadd.f32 %v1743, %v1831
        %1833 = vdwg.mxu0
        %1834 = vmatpush.bf16.msra.mxu0 %v1535
        %1835 = vmatpush.bf16.msra.mxu0 %v1534
        %1836 = vmatpush.bf16.msra.mxu0 %v1533
        %1837 = vmatpush.bf16.msra.mxu0 %v1532
        %1838 = vmatpush.bf16.msra.mxu0 %v1531
        %1839 = vmatpush.bf16.msra.mxu0 %v1530
        %1840 = vmatpush.bf16.msra.mxu0 %v1529
        %1841 = vmatpush.bf16.msra.mxu0 %v1528
        %1842 = vmatmul.bf16.gmra.mxu0 %v938
        %v1843 = vpop.f32.mrf.mxu0
        %v1844 = vadd.f32 %v1755, %v1843
        %v1845 = vpop.f32.mrf.mxu0
        %v1846 = vadd.f32 %v1757, %v1845
        %1847 = vmatmul.bf16.gmra.mxu0 %v947
        %v1848 = vpop.f32.mrf.mxu0
        %v1849 = vadd.f32 %v1760, %v1848
        %v1850 = vpop.f32.mrf.mxu0
        %v1851 = vadd.f32 %v1762, %v1850
        %1852 = vmatmul.bf16.gmra.mxu0 %v956
        %v1853 = vpop.f32.mrf.mxu0
        %v1854 = vadd.f32 %v1765, %v1853
        %v1855 = vpop.f32.mrf.mxu0
        %v1856 = vadd.f32 %v1767, %v1855
        %1857 = vmatmul.bf16.gmra.mxu0 %v965
        %v1858 = vpop.f32.mrf.mxu0
        %v1859 = vadd.f32 %v1770, %v1858
        %v1860 = vpop.f32.mrf.mxu0
        %v1861 = vadd.f32 %v1772, %v1860
        %1862 = vmatmul.bf16.gmra.mxu0 %v974
        %v1863 = vpop.f32.mrf.mxu0
        %v1864 = vadd.f32 %v1775, %v1863
        %v1865 = vpop.f32.mrf.mxu0
        %v1866 = vadd.f32 %v1777, %v1865
        %1867 = vmatmul.bf16.gmra.mxu0 %v983
        %v1868 = vpop.f32.mrf.mxu0
        %v1869 = vadd.f32 %v1780, %v1868
        %v1870 = vpop.f32.mrf.mxu0
        %v1871 = vadd.f32 %v1782, %v1870
        %1872 = vmatmul.bf16.gmra.mxu0 %v992
        %v1873 = vpop.f32.mrf.mxu0
        %v1874 = vadd.f32 %v1785, %v1873
        %v1875 = vpop.f32.mrf.mxu0
        %v1876 = vadd.f32 %v1787, %v1875
        %1877 = vmatmul.bf16.gmra.mxu0 %v1001
        %v1878 = vpop.f32.mrf.mxu0
        %v1879 = vadd.f32 %v1790, %v1878
        %v1880 = vpop.f32.mrf.mxu0
        %v1881 = vadd.f32 %v1792, %v1880
        %1882 = vmatmul.bf16.gmra.mxu0 %v1010
        %v1883 = vpop.f32.mrf.mxu0
        %v1884 = vadd.f32 %v1795, %v1883
        %v1885 = vpop.f32.mrf.mxu0
        %v1886 = vadd.f32 %v1797, %v1885
        %1887 = vmatmul.bf16.gmra.mxu0 %v1019
        %v1888 = vpop.f32.mrf.mxu0
        %v1889 = vadd.f32 %v1800, %v1888
        %v1890 = vpop.f32.mrf.mxu0
        %v1891 = vadd.f32 %v1802, %v1890
        %1892 = vmatmul.bf16.gmra.mxu0 %v1028
        %v1893 = vpop.f32.mrf.mxu0
        %v1894 = vadd.f32 %v1805, %v1893
        %v1895 = vpop.f32.mrf.mxu0
        %v1896 = vadd.f32 %v1807, %v1895
        %1897 = vmatmul.bf16.gmra.mxu0 %v1037
        %v1898 = vpop.f32.mrf.mxu0
        %v1899 = vadd.f32 %v1810, %v1898
        %v1900 = vpop.f32.mrf.mxu0
        %v1901 = vadd.f32 %v1812, %v1900
        %1902 = vmatmul.bf16.gmra.mxu0 %v1046
        %v1903 = vpop.f32.mrf.mxu0
        %v1904 = vadd.f32 %v1815, %v1903
        %v1905 = vpop.f32.mrf.mxu0
        %v1906 = vadd.f32 %v1817, %v1905
        %1907 = vmatmul.bf16.gmra.mxu0 %v1055
        %v1908 = vpop.f32.mrf.mxu0
        %v1909 = vadd.f32 %v1820, %v1908
        %v1910 = vpop.f32.mrf.mxu0
        %v1911 = vadd.f32 %v1822, %v1910
        %1912 = vmatmul.bf16.gmra.mxu0 %v1064
        %v1913 = vpop.f32.mrf.mxu0
        %v1914 = vadd.f32 %v1825, %v1913
        %v1915 = vpop.f32.mrf.mxu0
        %v1916 = vadd.f32 %v1827, %v1915
        %1917 = vmatmul.bf16.gmra.mxu0 %v1073
        %v1918 = vpop.f32.mrf.mxu0
        %v1919 = vadd.f32 %v1830, %v1918
        %v1920 = vpop.f32.mrf.mxu0
        %v1921 = vadd.f32 %v1832, %v1920
        %1922 = vdwg.mxu0
        %1923 = vmatpush.bf16.msra.mxu0 %v1543
        %1924 = vmatpush.bf16.msra.mxu0 %v1542
        %1925 = vmatpush.bf16.msra.mxu0 %v1541
        %1926 = vmatpush.bf16.msra.mxu0 %v1540
        %1927 = vmatpush.bf16.msra.mxu0 %v1539
        %1928 = vmatpush.bf16.msra.mxu0 %v1538
        %1929 = vmatpush.bf16.msra.mxu0 %v1537
        %1930 = vmatpush.bf16.msra.mxu0 %v1536
        %1931 = vmatmul.bf16.gmra.mxu0 %v939
        %v1932 = vpop.f32.mrf.mxu0
        %v1933 = vadd.f32 %v1844, %v1932
        %v1934 = vpop.f32.mrf.mxu0
        %v1935 = vadd.f32 %v1846, %v1934
        %1936 = vmatmul.bf16.gmra.mxu0 %v948
        %v1937 = vpop.f32.mrf.mxu0
        %v1938 = vadd.f32 %v1849, %v1937
        %v1939 = vpop.f32.mrf.mxu0
        %v1940 = vadd.f32 %v1851, %v1939
        %1941 = vmatmul.bf16.gmra.mxu0 %v957
        %v1942 = vpop.f32.mrf.mxu0
        %v1943 = vadd.f32 %v1854, %v1942
        %v1944 = vpop.f32.mrf.mxu0
        %v1945 = vadd.f32 %v1856, %v1944
        %1946 = vmatmul.bf16.gmra.mxu0 %v966
        %v1947 = vpop.f32.mrf.mxu0
        %v1948 = vadd.f32 %v1859, %v1947
        %v1949 = vpop.f32.mrf.mxu0
        %v1950 = vadd.f32 %v1861, %v1949
        %1951 = vmatmul.bf16.gmra.mxu0 %v975
        %v1952 = vpop.f32.mrf.mxu0
        %v1953 = vadd.f32 %v1864, %v1952
        %v1954 = vpop.f32.mrf.mxu0
        %v1955 = vadd.f32 %v1866, %v1954
        %1956 = vmatmul.bf16.gmra.mxu0 %v984
        %v1957 = vpop.f32.mrf.mxu0
        %v1958 = vadd.f32 %v1869, %v1957
        %v1959 = vpop.f32.mrf.mxu0
        %v1960 = vadd.f32 %v1871, %v1959
        %1961 = vmatmul.bf16.gmra.mxu0 %v993
        %v1962 = vpop.f32.mrf.mxu0
        %v1963 = vadd.f32 %v1874, %v1962
        %v1964 = vpop.f32.mrf.mxu0
        %v1965 = vadd.f32 %v1876, %v1964
        %1966 = vmatmul.bf16.gmra.mxu0 %v1002
        %v1967 = vpop.f32.mrf.mxu0
        %v1968 = vadd.f32 %v1879, %v1967
        %v1969 = vpop.f32.mrf.mxu0
        %v1970 = vadd.f32 %v1881, %v1969
        %1971 = vmatmul.bf16.gmra.mxu0 %v1011
        %v1972 = vpop.f32.mrf.mxu0
        %v1973 = vadd.f32 %v1884, %v1972
        %v1974 = vpop.f32.mrf.mxu0
        %v1975 = vadd.f32 %v1886, %v1974
        %1976 = vmatmul.bf16.gmra.mxu0 %v1020
        %v1977 = vpop.f32.mrf.mxu0
        %v1978 = vadd.f32 %v1889, %v1977
        %v1979 = vpop.f32.mrf.mxu0
        %v1980 = vadd.f32 %v1891, %v1979
        %1981 = vmatmul.bf16.gmra.mxu0 %v1029
        %v1982 = vpop.f32.mrf.mxu0
        %v1983 = vadd.f32 %v1894, %v1982
        %v1984 = vpop.f32.mrf.mxu0
        %v1985 = vadd.f32 %v1896, %v1984
        %1986 = vmatmul.bf16.gmra.mxu0 %v1038
        %v1987 = vpop.f32.mrf.mxu0
        %v1988 = vadd.f32 %v1899, %v1987
        %v1989 = vpop.f32.mrf.mxu0
        %v1990 = vadd.f32 %v1901, %v1989
        %1991 = vmatmul.bf16.gmra.mxu0 %v1047
        %v1992 = vpop.f32.mrf.mxu0
        %v1993 = vadd.f32 %v1904, %v1992
        %v1994 = vpop.f32.mrf.mxu0
        %v1995 = vadd.f32 %v1906, %v1994
        %1996 = vmatmul.bf16.gmra.mxu0 %v1056
        %v1997 = vpop.f32.mrf.mxu0
        %v1998 = vadd.f32 %v1909, %v1997
        %v1999 = vpop.f32.mrf.mxu0
        %v2000 = vadd.f32 %v1911, %v1999
        %2001 = vmatmul.bf16.gmra.mxu0 %v1065
        %v2002 = vpop.f32.mrf.mxu0
        %v2003 = vadd.f32 %v1914, %v2002
        %v2004 = vpop.f32.mrf.mxu0
        %v2005 = vadd.f32 %v1916, %v2004
        %2006 = vmatmul.bf16.gmra.mxu0 %v1074
        %v2007 = vpop.f32.mrf.mxu0
        %v2008 = vadd.f32 %v1919, %v2007
        %v2009 = vpop.f32.mrf.mxu0
        %v2010 = vadd.f32 %v1921, %v2009
        %2011 = vdwg.mxu0
        %2012 = vmatpush.bf16.msra.mxu0 %v1551
        %2013 = vmatpush.bf16.msra.mxu0 %v1550
        %2014 = vmatpush.bf16.msra.mxu0 %v1549
        %2015 = vmatpush.bf16.msra.mxu0 %v1548
        %2016 = vmatpush.bf16.msra.mxu0 %v1547
        %2017 = vmatpush.bf16.msra.mxu0 %v1546
        %2018 = vmatpush.bf16.msra.mxu0 %v1545
        %2019 = vmatpush.bf16.msra.mxu0 %v1544
        %2020 = vmatmul.bf16.gmra.mxu0 %v940
        %v2021 = vpop.f32.mrf.mxu0
        %v2022 = vadd.f32 %v1933, %v2021
        %v2023 = vpop.f32.mrf.mxu0
        %v2024 = vadd.f32 %v1935, %v2023
        %2025 = vmatmul.bf16.gmra.mxu0 %v949
        %v2026 = vpop.f32.mrf.mxu0
        %v2027 = vadd.f32 %v1938, %v2026
        %v2028 = vpop.f32.mrf.mxu0
        %v2029 = vadd.f32 %v1940, %v2028
        %2030 = vmatmul.bf16.gmra.mxu0 %v958
        %v2031 = vpop.f32.mrf.mxu0
        %v2032 = vadd.f32 %v1943, %v2031
        %v2033 = vpop.f32.mrf.mxu0
        %v2034 = vadd.f32 %v1945, %v2033
        %2035 = vmatmul.bf16.gmra.mxu0 %v967
        %v2036 = vpop.f32.mrf.mxu0
        %v2037 = vadd.f32 %v1948, %v2036
        %v2038 = vpop.f32.mrf.mxu0
        %v2039 = vadd.f32 %v1950, %v2038
        %2040 = vmatmul.bf16.gmra.mxu0 %v976
        %v2041 = vpop.f32.mrf.mxu0
        %v2042 = vadd.f32 %v1953, %v2041
        %v2043 = vpop.f32.mrf.mxu0
        %v2044 = vadd.f32 %v1955, %v2043
        %2045 = vmatmul.bf16.gmra.mxu0 %v985
        %v2046 = vpop.f32.mrf.mxu0
        %v2047 = vadd.f32 %v1958, %v2046
        %v2048 = vpop.f32.mrf.mxu0
        %v2049 = vadd.f32 %v1960, %v2048
        %2050 = vmatmul.bf16.gmra.mxu0 %v994
        %v2051 = vpop.f32.mrf.mxu0
        %v2052 = vadd.f32 %v1963, %v2051
        %v2053 = vpop.f32.mrf.mxu0
        %v2054 = vadd.f32 %v1965, %v2053
        %2055 = vmatmul.bf16.gmra.mxu0 %v1003
        %v2056 = vpop.f32.mrf.mxu0
        %v2057 = vadd.f32 %v1968, %v2056
        %v2058 = vpop.f32.mrf.mxu0
        %v2059 = vadd.f32 %v1970, %v2058
        %2060 = vmatmul.bf16.gmra.mxu0 %v1012
        %v2061 = vpop.f32.mrf.mxu0
        %v2062 = vadd.f32 %v1973, %v2061
        %v2063 = vpop.f32.mrf.mxu0
        %v2064 = vadd.f32 %v1975, %v2063
        %2065 = vmatmul.bf16.gmra.mxu0 %v1021
        %v2066 = vpop.f32.mrf.mxu0
        %v2067 = vadd.f32 %v1978, %v2066
        %v2068 = vpop.f32.mrf.mxu0
        %v2069 = vadd.f32 %v1980, %v2068
        %2070 = vmatmul.bf16.gmra.mxu0 %v1030
        %v2071 = vpop.f32.mrf.mxu0
        %v2072 = vadd.f32 %v1983, %v2071
        %v2073 = vpop.f32.mrf.mxu0
        %v2074 = vadd.f32 %v1985, %v2073
        %2075 = vmatmul.bf16.gmra.mxu0 %v1039
        %v2076 = vpop.f32.mrf.mxu0
        %v2077 = vadd.f32 %v1988, %v2076
        %v2078 = vpop.f32.mrf.mxu0
        %v2079 = vadd.f32 %v1990, %v2078
        %2080 = vmatmul.bf16.gmra.mxu0 %v1048
        %v2081 = vpop.f32.mrf.mxu0
        %v2082 = vadd.f32 %v1993, %v2081
        %v2083 = vpop.f32.mrf.mxu0
        %v2084 = vadd.f32 %v1995, %v2083
        %2085 = vmatmul.bf16.gmra.mxu0 %v1057
        %v2086 = vpop.f32.mrf.mxu0
        %v2087 = vadd.f32 %v1998, %v2086
        %v2088 = vpop.f32.mrf.mxu0
        %v2089 = vadd.f32 %v2000, %v2088
        %2090 = vmatmul.bf16.gmra.mxu0 %v1066
        %v2091 = vpop.f32.mrf.mxu0
        %v2092 = vadd.f32 %v2003, %v2091
        %v2093 = vpop.f32.mrf.mxu0
        %v2094 = vadd.f32 %v2005, %v2093
        %2095 = vmatmul.bf16.gmra.mxu0 %v1075
        %v2096 = vpop.f32.mrf.mxu0
        %v2097 = vadd.f32 %v2008, %v2096
        %v2098 = vpop.f32.mrf.mxu0
        %v2099 = vadd.f32 %v2010, %v2098
        %2100 = vdwg.mxu0
        %2101 = vmatpush.bf16.msra.mxu0 %v1559
        %2102 = vmatpush.bf16.msra.mxu0 %v1558
        %2103 = vmatpush.bf16.msra.mxu0 %v1557
        %2104 = vmatpush.bf16.msra.mxu0 %v1556
        %2105 = vmatpush.bf16.msra.mxu0 %v1555
        %2106 = vmatpush.bf16.msra.mxu0 %v1554
        %2107 = vmatpush.bf16.msra.mxu0 %v1553
        %2108 = vmatpush.bf16.msra.mxu0 %v1552
        %2109 = vmatmul.bf16.gmra.mxu0 %v941
        %v2110 = vpop.f32.mrf.mxu0
        %v2111 = vadd.f32 %v2022, %v2110
        %v2112 = vpop.f32.mrf.mxu0
        %v2113 = vadd.f32 %v2024, %v2112
        %2114 = vmatmul.bf16.gmra.mxu0 %v950
        %v2115 = vpop.f32.mrf.mxu0
        %v2116 = vadd.f32 %v2027, %v2115
        %v2117 = vpop.f32.mrf.mxu0
        %v2118 = vadd.f32 %v2029, %v2117
        %2119 = vmatmul.bf16.gmra.mxu0 %v959
        %v2120 = vpop.f32.mrf.mxu0
        %v2121 = vadd.f32 %v2032, %v2120
        %v2122 = vpop.f32.mrf.mxu0
        %v2123 = vadd.f32 %v2034, %v2122
        %2124 = vmatmul.bf16.gmra.mxu0 %v968
        %v2125 = vpop.f32.mrf.mxu0
        %v2126 = vadd.f32 %v2037, %v2125
        %v2127 = vpop.f32.mrf.mxu0
        %v2128 = vadd.f32 %v2039, %v2127
        %2129 = vmatmul.bf16.gmra.mxu0 %v977
        %v2130 = vpop.f32.mrf.mxu0
        %v2131 = vadd.f32 %v2042, %v2130
        %v2132 = vpop.f32.mrf.mxu0
        %v2133 = vadd.f32 %v2044, %v2132
        %2134 = vmatmul.bf16.gmra.mxu0 %v986
        %v2135 = vpop.f32.mrf.mxu0
        %v2136 = vadd.f32 %v2047, %v2135
        %v2137 = vpop.f32.mrf.mxu0
        %v2138 = vadd.f32 %v2049, %v2137
        %2139 = vmatmul.bf16.gmra.mxu0 %v995
        %v2140 = vpop.f32.mrf.mxu0
        %v2141 = vadd.f32 %v2052, %v2140
        %v2142 = vpop.f32.mrf.mxu0
        %v2143 = vadd.f32 %v2054, %v2142
        %2144 = vmatmul.bf16.gmra.mxu0 %v1004
        %v2145 = vpop.f32.mrf.mxu0
        %v2146 = vadd.f32 %v2057, %v2145
        %v2147 = vpop.f32.mrf.mxu0
        %v2148 = vadd.f32 %v2059, %v2147
        %2149 = vmatmul.bf16.gmra.mxu0 %v1013
        %v2150 = vpop.f32.mrf.mxu0
        %v2151 = vadd.f32 %v2062, %v2150
        %v2152 = vpop.f32.mrf.mxu0
        %v2153 = vadd.f32 %v2064, %v2152
        %2154 = vmatmul.bf16.gmra.mxu0 %v1022
        %v2155 = vpop.f32.mrf.mxu0
        %v2156 = vadd.f32 %v2067, %v2155
        %v2157 = vpop.f32.mrf.mxu0
        %v2158 = vadd.f32 %v2069, %v2157
        %2159 = vmatmul.bf16.gmra.mxu0 %v1031
        %v2160 = vpop.f32.mrf.mxu0
        %v2161 = vadd.f32 %v2072, %v2160
        %v2162 = vpop.f32.mrf.mxu0
        %v2163 = vadd.f32 %v2074, %v2162
        %2164 = vmatmul.bf16.gmra.mxu0 %v1040
        %v2165 = vpop.f32.mrf.mxu0
        %v2166 = vadd.f32 %v2077, %v2165
        %v2167 = vpop.f32.mrf.mxu0
        %v2168 = vadd.f32 %v2079, %v2167
        %2169 = vmatmul.bf16.gmra.mxu0 %v1049
        %v2170 = vpop.f32.mrf.mxu0
        %v2171 = vadd.f32 %v2082, %v2170
        %v2172 = vpop.f32.mrf.mxu0
        %v2173 = vadd.f32 %v2084, %v2172
        %2174 = vmatmul.bf16.gmra.mxu0 %v1058
        %v2175 = vpop.f32.mrf.mxu0
        %v2176 = vadd.f32 %v2087, %v2175
        %v2177 = vpop.f32.mrf.mxu0
        %v2178 = vadd.f32 %v2089, %v2177
        %2179 = vmatmul.bf16.gmra.mxu0 %v1067
        %v2180 = vpop.f32.mrf.mxu0
        %v2181 = vadd.f32 %v2092, %v2180
        %v2182 = vpop.f32.mrf.mxu0
        %v2183 = vadd.f32 %v2094, %v2182
        %2184 = vmatmul.bf16.gmra.mxu0 %v1076
        %v2185 = vpop.f32.mrf.mxu0
        %v2186 = vadd.f32 %v2097, %v2185
        %v2187 = vpop.f32.mrf.mxu0
        %v2188 = vadd.f32 %v2099, %v2187
        %2189 = vdwg.mxu0
        %2190 = vmatpush.bf16.msra.mxu0 %v1567
        %2191 = vmatpush.bf16.msra.mxu0 %v1566
        %2192 = vmatpush.bf16.msra.mxu0 %v1565
        %2193 = vmatpush.bf16.msra.mxu0 %v1564
        %2194 = vmatpush.bf16.msra.mxu0 %v1563
        %2195 = vmatpush.bf16.msra.mxu0 %v1562
        %2196 = vmatpush.bf16.msra.mxu0 %v1561
        %2197 = vmatpush.bf16.msra.mxu0 %v1560
        %2198 = vmatmul.bf16.gmra.mxu0 %v942
        %v2199 = vpop.f32.mrf.mxu0
        %v2200 = vadd.f32 %v2111, %v2199
        %v2201 = vpop.f32.mrf.mxu0
        %v2202 = vadd.f32 %v2113, %v2201
        %2203 = vmatmul.bf16.gmra.mxu0 %v951
        %v2204 = vpop.f32.mrf.mxu0
        %v2205 = vadd.f32 %v2116, %v2204
        %v2206 = vpop.f32.mrf.mxu0
        %v2207 = vadd.f32 %v2118, %v2206
        %2208 = vmatmul.bf16.gmra.mxu0 %v960
        %v2209 = vpop.f32.mrf.mxu0
        %v2210 = vadd.f32 %v2121, %v2209
        %v2211 = vpop.f32.mrf.mxu0
        %v2212 = vadd.f32 %v2123, %v2211
        %2213 = vmatmul.bf16.gmra.mxu0 %v969
        %v2214 = vpop.f32.mrf.mxu0
        %v2215 = vadd.f32 %v2126, %v2214
        %v2216 = vpop.f32.mrf.mxu0
        %v2217 = vadd.f32 %v2128, %v2216
        %2218 = vmatmul.bf16.gmra.mxu0 %v978
        %v2219 = vpop.f32.mrf.mxu0
        %v2220 = vadd.f32 %v2131, %v2219
        %v2221 = vpop.f32.mrf.mxu0
        %v2222 = vadd.f32 %v2133, %v2221
        %2223 = vmatmul.bf16.gmra.mxu0 %v987
        %v2224 = vpop.f32.mrf.mxu0
        %v2225 = vadd.f32 %v2136, %v2224
        %v2226 = vpop.f32.mrf.mxu0
        %v2227 = vadd.f32 %v2138, %v2226
        %2228 = vmatmul.bf16.gmra.mxu0 %v996
        %v2229 = vpop.f32.mrf.mxu0
        %v2230 = vadd.f32 %v2141, %v2229
        %v2231 = vpop.f32.mrf.mxu0
        %v2232 = vadd.f32 %v2143, %v2231
        %2233 = vmatmul.bf16.gmra.mxu0 %v1005
        %v2234 = vpop.f32.mrf.mxu0
        %v2235 = vadd.f32 %v2146, %v2234
        %v2236 = vpop.f32.mrf.mxu0
        %v2237 = vadd.f32 %v2148, %v2236
        %2238 = vmatmul.bf16.gmra.mxu0 %v1014
        %v2239 = vpop.f32.mrf.mxu0
        %v2240 = vadd.f32 %v2151, %v2239
        %v2241 = vpop.f32.mrf.mxu0
        %v2242 = vadd.f32 %v2153, %v2241
        %2243 = vmatmul.bf16.gmra.mxu0 %v1023
        %v2244 = vpop.f32.mrf.mxu0
        %v2245 = vadd.f32 %v2156, %v2244
        %v2246 = vpop.f32.mrf.mxu0
        %v2247 = vadd.f32 %v2158, %v2246
        %2248 = vmatmul.bf16.gmra.mxu0 %v1032
        %v2249 = vpop.f32.mrf.mxu0
        %v2250 = vadd.f32 %v2161, %v2249
        %v2251 = vpop.f32.mrf.mxu0
        %v2252 = vadd.f32 %v2163, %v2251
        %2253 = vmatmul.bf16.gmra.mxu0 %v1041
        %v2254 = vpop.f32.mrf.mxu0
        %v2255 = vadd.f32 %v2166, %v2254
        %v2256 = vpop.f32.mrf.mxu0
        %v2257 = vadd.f32 %v2168, %v2256
        %2258 = vmatmul.bf16.gmra.mxu0 %v1050
        %v2259 = vpop.f32.mrf.mxu0
        %v2260 = vadd.f32 %v2171, %v2259
        %v2261 = vpop.f32.mrf.mxu0
        %v2262 = vadd.f32 %v2173, %v2261
        %2263 = vmatmul.bf16.gmra.mxu0 %v1059
        %v2264 = vpop.f32.mrf.mxu0
        %v2265 = vadd.f32 %v2176, %v2264
        %v2266 = vpop.f32.mrf.mxu0
        %v2267 = vadd.f32 %v2178, %v2266
        %2268 = vmatmul.bf16.gmra.mxu0 %v1068
        %v2269 = vpop.f32.mrf.mxu0
        %v2270 = vadd.f32 %v2181, %v2269
        %v2271 = vpop.f32.mrf.mxu0
        %v2272 = vadd.f32 %v2183, %v2271
        %2273 = vmatmul.bf16.gmra.mxu0 %v1077
        %v2274 = vpop.f32.mrf.mxu0
        %v2275 = vadd.f32 %v2186, %v2274
        %v2276 = vpop.f32.mrf.mxu0
        %v2277 = vadd.f32 %v2188, %v2276
        %2278 = vdwg.mxu0
        %2279 = vmatpush.bf16.msra.mxu0 %v1575
        %2280 = vmatpush.bf16.msra.mxu0 %v1574
        %2281 = vmatpush.bf16.msra.mxu0 %v1573
        %2282 = vmatpush.bf16.msra.mxu0 %v1572
        %2283 = vmatpush.bf16.msra.mxu0 %v1571
        %2284 = vmatpush.bf16.msra.mxu0 %v1570
        %2285 = vmatpush.bf16.msra.mxu0 %v1569
        %2286 = vmatpush.bf16.msra.mxu0 %v1568
        %2287 = vmatmul.bf16.gmra.mxu0 %v943
        %v2288 = vpop.f32.mrf.mxu0
        %v2289 = vadd.f32 %v2200, %v2288
        %v2290 = vpop.f32.mrf.mxu0
        %v2291 = vadd.f32 %v2202, %v2290
        %2292 = vmatmul.bf16.gmra.mxu0 %v952
        %v2293 = vpop.f32.mrf.mxu0
        %v2294 = vadd.f32 %v2205, %v2293
        %v2295 = vpop.f32.mrf.mxu0
        %v2296 = vadd.f32 %v2207, %v2295
        %2297 = vmatmul.bf16.gmra.mxu0 %v961
        %v2298 = vpop.f32.mrf.mxu0
        %v2299 = vadd.f32 %v2210, %v2298
        %v2300 = vpop.f32.mrf.mxu0
        %v2301 = vadd.f32 %v2212, %v2300
        %2302 = vmatmul.bf16.gmra.mxu0 %v970
        %v2303 = vpop.f32.mrf.mxu0
        %v2304 = vadd.f32 %v2215, %v2303
        %v2305 = vpop.f32.mrf.mxu0
        %v2306 = vadd.f32 %v2217, %v2305
        %2307 = vmatmul.bf16.gmra.mxu0 %v979
        %v2308 = vpop.f32.mrf.mxu0
        %v2309 = vadd.f32 %v2220, %v2308
        %v2310 = vpop.f32.mrf.mxu0
        %v2311 = vadd.f32 %v2222, %v2310
        %2312 = vmatmul.bf16.gmra.mxu0 %v988
        %v2313 = vpop.f32.mrf.mxu0
        %v2314 = vadd.f32 %v2225, %v2313
        %v2315 = vpop.f32.mrf.mxu0
        %v2316 = vadd.f32 %v2227, %v2315
        %2317 = vmatmul.bf16.gmra.mxu0 %v997
        %v2318 = vpop.f32.mrf.mxu0
        %v2319 = vadd.f32 %v2230, %v2318
        %v2320 = vpop.f32.mrf.mxu0
        %v2321 = vadd.f32 %v2232, %v2320
        %2322 = vmatmul.bf16.gmra.mxu0 %v1006
        %v2323 = vpop.f32.mrf.mxu0
        %v2324 = vadd.f32 %v2235, %v2323
        %v2325 = vpop.f32.mrf.mxu0
        %v2326 = vadd.f32 %v2237, %v2325
        %2327 = vmatmul.bf16.gmra.mxu0 %v1015
        %v2328 = vpop.f32.mrf.mxu0
        %v2329 = vadd.f32 %v2240, %v2328
        %v2330 = vpop.f32.mrf.mxu0
        %v2331 = vadd.f32 %v2242, %v2330
        %2332 = vmatmul.bf16.gmra.mxu0 %v1024
        %v2333 = vpop.f32.mrf.mxu0
        %v2334 = vadd.f32 %v2245, %v2333
        %v2335 = vpop.f32.mrf.mxu0
        %v2336 = vadd.f32 %v2247, %v2335
        %2337 = vmatmul.bf16.gmra.mxu0 %v1033
        %v2338 = vpop.f32.mrf.mxu0
        %v2339 = vadd.f32 %v2250, %v2338
        %v2340 = vpop.f32.mrf.mxu0
        %v2341 = vadd.f32 %v2252, %v2340
        %2342 = vmatmul.bf16.gmra.mxu0 %v1042
        %v2343 = vpop.f32.mrf.mxu0
        %v2344 = vadd.f32 %v2255, %v2343
        %v2345 = vpop.f32.mrf.mxu0
        %v2346 = vadd.f32 %v2257, %v2345
        %2347 = vmatmul.bf16.gmra.mxu0 %v1051
        %v2348 = vpop.f32.mrf.mxu0
        %v2349 = vadd.f32 %v2260, %v2348
        %v2350 = vpop.f32.mrf.mxu0
        %v2351 = vadd.f32 %v2262, %v2350
        %2352 = vmatmul.bf16.gmra.mxu0 %v1060
        %v2353 = vpop.f32.mrf.mxu0
        %v2354 = vadd.f32 %v2265, %v2353
        %v2355 = vpop.f32.mrf.mxu0
        %v2356 = vadd.f32 %v2267, %v2355
        %2357 = vmatmul.bf16.gmra.mxu0 %v1069
        %v2358 = vpop.f32.mrf.mxu0
        %v2359 = vadd.f32 %v2270, %v2358
        %v2360 = vpop.f32.mrf.mxu0
        %v2361 = vadd.f32 %v2272, %v2360
        %2362 = vmatmul.bf16.gmra.mxu0 %v1078
        %v2363 = vpop.f32.mrf.mxu0
        %v2364 = vadd.f32 %v2275, %v2363
        %v2365 = vpop.f32.mrf.mxu0
        %v2366 = vadd.f32 %v2277, %v2365
        %2367 = vdwg.mxu0
        %2368 = vmatpush.bf16.msra.mxu0 %v1583
        %2369 = vmatpush.bf16.msra.mxu0 %v1582
        %2370 = vmatpush.bf16.msra.mxu0 %v1581
        %2371 = vmatpush.bf16.msra.mxu0 %v1580
        %2372 = vmatpush.bf16.msra.mxu0 %v1579
        %2373 = vmatpush.bf16.msra.mxu0 %v1578
        %2374 = vmatpush.bf16.msra.mxu0 %v1577
        %2375 = vmatpush.bf16.msra.mxu0 %v1576
        %2376 = vmatmul.bf16.gmra.mxu0 %v944
        %v2377 = vpop.f32.mrf.mxu0
        %v2378 = vadd.f32 %v2289, %v2377
        %v2379 = vpop.f32.mrf.mxu0
        %v2380 = vadd.f32 %v2291, %v2379
        %2381 = vmatmul.bf16.gmra.mxu0 %v953
        %v2382 = vpop.f32.mrf.mxu0
        %v2383 = vadd.f32 %v2294, %v2382
        %v2384 = vpop.f32.mrf.mxu0
        %v2385 = vadd.f32 %v2296, %v2384
        %2386 = vmatmul.bf16.gmra.mxu0 %v962
        %v2387 = vpop.f32.mrf.mxu0
        %v2388 = vadd.f32 %v2299, %v2387
        %v2389 = vpop.f32.mrf.mxu0
        %v2390 = vadd.f32 %v2301, %v2389
        %2391 = vmatmul.bf16.gmra.mxu0 %v971
        %v2392 = vpop.f32.mrf.mxu0
        %v2393 = vadd.f32 %v2304, %v2392
        %v2394 = vpop.f32.mrf.mxu0
        %v2395 = vadd.f32 %v2306, %v2394
        %2396 = vmatmul.bf16.gmra.mxu0 %v980
        %v2397 = vpop.f32.mrf.mxu0
        %v2398 = vadd.f32 %v2309, %v2397
        %v2399 = vpop.f32.mrf.mxu0
        %v2400 = vadd.f32 %v2311, %v2399
        %2401 = vmatmul.bf16.gmra.mxu0 %v989
        %v2402 = vpop.f32.mrf.mxu0
        %v2403 = vadd.f32 %v2314, %v2402
        %v2404 = vpop.f32.mrf.mxu0
        %v2405 = vadd.f32 %v2316, %v2404
        %2406 = vmatmul.bf16.gmra.mxu0 %v998
        %v2407 = vpop.f32.mrf.mxu0
        %v2408 = vadd.f32 %v2319, %v2407
        %v2409 = vpop.f32.mrf.mxu0
        %v2410 = vadd.f32 %v2321, %v2409
        %2411 = vmatmul.bf16.gmra.mxu0 %v1007
        %v2412 = vpop.f32.mrf.mxu0
        %v2413 = vadd.f32 %v2324, %v2412
        %v2414 = vpop.f32.mrf.mxu0
        %v2415 = vadd.f32 %v2326, %v2414
        %2416 = vmatmul.bf16.gmra.mxu0 %v1016
        %v2417 = vpop.f32.mrf.mxu0
        %v2418 = vadd.f32 %v2329, %v2417
        %v2419 = vpop.f32.mrf.mxu0
        %v2420 = vadd.f32 %v2331, %v2419
        %2421 = vmatmul.bf16.gmra.mxu0 %v1025
        %v2422 = vpop.f32.mrf.mxu0
        %v2423 = vadd.f32 %v2334, %v2422
        %v2424 = vpop.f32.mrf.mxu0
        %v2425 = vadd.f32 %v2336, %v2424
        %2426 = vmatmul.bf16.gmra.mxu0 %v1034
        %v2427 = vpop.f32.mrf.mxu0
        %v2428 = vadd.f32 %v2339, %v2427
        %v2429 = vpop.f32.mrf.mxu0
        %v2430 = vadd.f32 %v2341, %v2429
        %2431 = vmatmul.bf16.gmra.mxu0 %v1043
        %v2432 = vpop.f32.mrf.mxu0
        %v2433 = vadd.f32 %v2344, %v2432
        %v2434 = vpop.f32.mrf.mxu0
        %v2435 = vadd.f32 %v2346, %v2434
        %2436 = vmatmul.bf16.gmra.mxu0 %v1052
        %v2437 = vpop.f32.mrf.mxu0
        %v2438 = vadd.f32 %v2349, %v2437
        %v2439 = vpop.f32.mrf.mxu0
        %v2440 = vadd.f32 %v2351, %v2439
        %2441 = vmatmul.bf16.gmra.mxu0 %v1061
        %v2442 = vpop.f32.mrf.mxu0
        %v2443 = vadd.f32 %v2354, %v2442
        %v2444 = vpop.f32.mrf.mxu0
        %v2445 = vadd.f32 %v2356, %v2444
        %2446 = vmatmul.bf16.gmra.mxu0 %v1070
        %v2447 = vpop.f32.mrf.mxu0
        %v2448 = vadd.f32 %v2359, %v2447
        %v2449 = vpop.f32.mrf.mxu0
        %v2450 = vadd.f32 %v2361, %v2449
        %2451 = vmatmul.bf16.gmra.mxu0 %v1079
        %v2452 = vpop.f32.mrf.mxu0
        %v2453 = vadd.f32 %v2364, %v2452
        %v2454 = vpop.f32.mrf.mxu0
        %v2455 = vadd.f32 %v2366, %v2454
        %2456 = vdwg.mxu0
        %2457 = vst [vmem:[%s181] sm:$0xff] %v2378
        %2458 = vst [vmem:[%s181 + $0x8] sm:$0xff] %v2380
        %2459 = vst [vmem:[%s181 + $0x10] sm:$0xff] %v2383
        %2460 = vst [vmem:[%s181 + $0x18] sm:$0xff] %v2385
        %2461 = vst [vmem:[%s181 + $0x20] sm:$0xff] %v2388
        %2462 = vst [vmem:[%s181 + $0x28] sm:$0xff] %v2390
        %2463 = vst [vmem:[%s181 + $0x30] sm:$0xff] %v2393
        %2464 = vst [vmem:[%s181 + $0x38] sm:$0xff] %v2395
        %2465 = vst [vmem:[%s181 + $0x40] sm:$0xff] %v2398
        %2466 = vst [vmem:[%s181 + $0x48] sm:$0xff] %v2400
        %2467 = vst [vmem:[%s181 + $0x50] sm:$0xff] %v2403
        %2468 = vst [vmem:[%s181 + $0x58] sm:$0xff] %v2405
        %2469 = vst [vmem:[%s181 + $0x60] sm:$0xff] %v2408
        %2470 = vst [vmem:[%s181 + $0x68] sm:$0xff] %v2410
        %2471 = vst [vmem:[%s181 + $0x70] sm:$0xff] %v2413
        %2472 = vst [vmem:[%s181 + $0x78] sm:$0xff] %v2415
        %2473 = vst [vmem:[%s181 + $0x80] sm:$0xff] %v2418
        %2474 = vst [vmem:[%s181 + $0x88] sm:$0xff] %v2420
        %2475 = vst [vmem:[%s181 + $0x90] sm:$0xff] %v2423
        %2476 = vst [vmem:[%s181 + $0x98] sm:$0xff] %v2425
        %2477 = vst [vmem:[%s181 + $0xa0] sm:$0xff] %v2428
        %2478 = vst [vmem:[%s181 + $0xa8] sm:$0xff] %v2430
        %2479 = vst [vmem:[%s181 + $0xb0] sm:$0xff] %v2433
        %2480 = vst [vmem:[%s181 + $0xb8] sm:$0xff] %v2435
        %2481 = vst [vmem:[%s181 + $0xc0] sm:$0xff] %v2438
        %2482 = vst [vmem:[%s181 + $0xc8] sm:$0xff] %v2440
        %2483 = vst [vmem:[%s181 + $0xd0] sm:$0xff] %v2443
        %2484 = vst [vmem:[%s181 + $0xd8] sm:$0xff] %v2445
        %2485 = vst [vmem:[%s181 + $0xe0] sm:$0xff] %v2448
        %2486 = vst [vmem:[%s181 + $0xe8] sm:$0xff] %v2450
        %2487 = vst [vmem:[%s181 + $0xf0] sm:$0xff] %v2453
        %2488 = vst [vmem:[%s181 + $0xf8] sm:$0xff] %v2455
        %s2489 = sand.u32 %s75, 1
        %s2490 = scalar_lea.sflag [#allocation4], %s2489
        %s2491 = sand.u32 %s75, 1
        %s2492 = smul.addr %s2491, 256
        %s2493 = scalar_lea.vmem [#allocation7], %s2492
        // Predicated region
        $region37: #{tpu_custom_call.1} parent=27 // pred_check
          %p2494 = pneg %p85
        $region38: #{tpu_custom_call.1} parent=27 // pred_check_branch
          %2496 = sbr.rel (%p2494) target = $region40
        $region39: #{tpu_custom_call.1} parent=27 // pred_region
          %s2497 = smul.u32 32, %s20
          %2499 = vsyncadd %s2490, 0
          %s2500 = smul.addr %s2497, 8
          %s2501 = scalar_lea.hbm %s2, %s2500
          %s2502 = sshll.u32 %s2493, 4
          %s2503 = int_to_ptr.vmem [resolvable:$true] %s2502
          %s2504 = sshll.u32 %s2501, 4
          %s2505 = int_to_ptr.hbm [resolvable:$true] %s2504
          %2510 = dma.vmem_to_hbm [thread:$0]  %s2503, 4096, %s2505, %s2490, 128, 128, 8
        $region40: #{tpu_custom_call.1} parent=27 // pred_fallthru
          _
      $region28: #{tpu_custom_call.1} parent=5 // pred_fallthru
        _
      %p2511 = scmp.le.s32.totalorder 2, %s15
      // Predicated region
      $region41: #{tpu_custom_call.1} parent=5 // pred_check
        %p2512 = pneg %p2511
      $region42: #{tpu_custom_call.1} parent=5 // pred_check_branch
        %2514 = sbr.rel (%p2512) target = $region44
      $region43: #{tpu_custom_call.1} parent=5 // pred_region
        %s2515 = ssub.s32 %s15, 2
        // Predicated region
        $region45: #{tpu_custom_call.1} parent=43 // pred_check
          %p2516 = pneg %p91
        $region46: #{tpu_custom_call.1} parent=43 // pred_check_branch
          %2518 = sbr.rel (%p2516) target = $region48
        $region47: #{tpu_custom_call.1} parent=43 // pred_region
          %s2519 = sand.u32 %s76, 1
          %s2520 = scalar_lea.sflag [#allocation4], %s2519
          %s2521 = sand.u32 %s76, 1
          %s2522 = smul.addr %s2521, 256
          %s2523 = scalar_lea.vmem [#allocation7], %s2522
          %2525 = dma.done %s2520, 4096
        $region48: #{tpu_custom_call.1} parent=43 // pred_fallthru
          _
      $region44: #{tpu_custom_call.1} parent=5 // pred_fallthru
        _
    $region6: #{tpu_custom_call.1} parent=1 // loop_footer
      %s19 = sadd.s32 1, %s15
    $region7: #{tpu_custom_call.1} parent=1 // loop_footer_branch
      %14 = sbr.rel target = $region3
    $region8: #{tpu_custom_call.1} parent=1 // loop_exit
      _
    %2526 = vsyncpa [#allocation3], 1
    %s2527 = scalar_lea.sflag [#allocation3], 1
    %2528 = vsyncpa %s2527, 1
    %2529 = vsyncpa [#allocation6], 1
    %2530 = vsyncpa [#allocation4], 1
    %s2531 = scalar_lea.sflag [#allocation4], 1
    %2532 = vsyncpa %s2531, 1

</llo_original>
